<compile_context>
chip_gen: v7x
topology: tpu7x:2x2x1
jax: 0.10.0
libtpu: 0.0.40
codegen_flags: <defaults>
</compile_context>

<pallas_src>
import functools
import math

import jax
import jax.numpy as jnp
from jax.experimental import pallas as pl
from jax.experimental.pallas import tpu as pltpu  # noqa: F401  (TPU backend)


# ----------------------- math helpers (shared by kernel & reference) --------

def _sigmoid(x):
    # tanh-based sigmoid (tanh is a native EUP op); same formula used in the
    # kernel and the pure-jnp reference so results match bit-for-bit-ish.
    return 0.5 * (jnp.tanh(0.5 * x) + 1.0)


def _softplus(x):
    # numerically stable softplus using only exp/log/abs/max.
    return jnp.maximum(x, 0.0) + jnp.log(1.0 + jnp.exp(-jnp.abs(x)))


def _softmax_last(x):
    m = jnp.max(x, axis=-1, keepdims=True)
    e = jnp.exp(x - m)
    return e / jnp.sum(e, axis=-1, keepdims=True)


def _roll_p1(x):
    # result[..., i] = x[..., (i - 1) mod N]
    return jnp.concatenate([x[:, -1:], x[:, :-1]], axis=-1)


def _roll_m1(x):
    # result[..., i] = x[..., (i + 1) mod N]
    return jnp.concatenate([x[:, 1:], x[:, :1]], axis=-1)


def _address_and_write(out, w_prev, mem, M):
    """Shared body: split fc output, address memory, compute new memory."""
    k     = jnp.tanh(out[:, 0:M])                       # key          (B, M)
    beta  = _softplus(out[:, M:M + 1])                  # strength     (B, 1)
    g     = _sigmoid(out[:, M + 1:M + 2])               # interp gate  (B, 1)
    s     = _softmax_last(out[:, M + 2:M + 5])          # shift kernel (B, 3)
    gamma = 1.0 + _softplus(out[:, M + 5:M + 6])        # sharpen      (B, 1)
    a     = jnp.tanh(out[:, M + 6:2 * M + 6])           # add vector   (B, M)
    e     = _sigmoid(out[:, 2 * M + 6:3 * M + 6])       # erase vector (B, M)

    # --- content addressing: softmax(beta * cosine_sim(mem, k)) over N ---
    mem_eps = mem + 1e-16
    k_eps = k + 1e-16
    dot = jnp.sum(mem_eps * k_eps[:, None, :], axis=-1)                # (B, N)
    mem_norm = jnp.sqrt(jnp.sum(mem_eps * mem_eps, axis=-1))           # (B, N)
    k_norm = jnp.sqrt(jnp.sum(k_eps * k_eps, axis=-1, keepdims=True))  # (B, 1)
    sim = dot / (jnp.maximum(mem_norm, 1e-8) * jnp.maximum(k_norm, 1e-8))
    wc = _softmax_last(beta * sim)                                     # (B, N)

    # --- interpolation ---
    wg = g * wc + (1.0 - g) * w_prev

    # --- circular 3-tap shift: w~[i] = s0*wg[i-1] + s1*wg[i] + s2*wg[i+1] ---
    w_tilde = s[:, 0:1] * _roll_p1(wg) + s[:, 1:2] * wg + s[:, 2:3] * _roll_m1(wg)

    # --- sharpening: w = w~^gamma / sum(w~^gamma) ---
    w_pow = jnp.exp(gamma * jnp.log(jnp.maximum(w_tilde, 1e-30)))
    w = w_pow / (jnp.sum(w_pow, axis=-1, keepdims=True) + 1e-16)

    # --- memory write (erase + add): mem * (1 - w⊗e) + w⊗a ---
    erase = w[:, :, None] * e[:, None, :]                              # (B,N,M)
    add = w[:, :, None] * a[:, None, :]                                # (B,N,M)
    mem_new = mem * (1.0 - erase) + add
    return w, mem_new


# ------------------------------- Pallas kernel -------------------------------

def _write_head_kernel(x_ref, w_prev_ref, mem_ref, wfc_ref, bfc_ref,
                       w_out_ref, mem_out_ref, *, M):
    # single lane-dense matmul for fc_write (weight stored transposed)
    out = jnp.dot(x_ref[...], wfc_ref[...],
                  preferred_element_type=jnp.float32) + bfc_ref[...]

    w, mem_new = _address_and_write(out, w_prev_ref[...], mem_ref[...], M)

    w_out_ref[...] = w.astype(w_out_ref.dtype)
    mem_out_ref[...] = mem_new.astype(mem_out_ref.dtype)


def write_head_forward(x, w_prev, memory, w_fc_t, b_fc):
    """x: (B, ctrl); w_prev: (B, N); memory: (B, N, M). Returns (w, mem_new)."""
    batch, N = w_prev.shape
    M = memory.shape[-1]

    full = lambda shape: pl.BlockSpec(shape, lambda: (0,) * len(shape))

    kernel = functools.partial(_write_head_kernel, M=M)
    w_new, mem_new = pl.pallas_call(
        kernel,
        out_shape=(
            jax.ShapeDtypeStruct((batch, N), jnp.float32),
            jax.ShapeDtypeStruct((batch, N, M), jnp.float32),
        ),
        grid=(),
        in_specs=[
            full(x.shape),
            full(w_prev.shape),
            full(memory.shape),
            full(w_fc_t.shape),
            full(b_fc.shape),
        ],
        out_specs=(
            full((batch, N)),
            full((batch, N, M)),
        ),
    )(x, w_prev, memory, w_fc_t, b_fc)
    return w_new, mem_new


# ------------------------------- module wrapper ------------------------------

class WriteHeadPallas:
    """JAX/Pallas port of the NTM WriteHead (single-step forward).

    The entire forward (fc_write + _address_memory + memory.write) runs in one
    fused Pallas kernel. The memory tensor is passed in and the updated memory
    is returned (PyTorch mutates self.memory in place).
    """

    def __init__(self, N, M, ctrl_size, key):
        self.N = N
        self.M = M
        self.ctrl_size = ctrl_size
        self.write_vector = [M, 1, 1, 3, 1, M, M]
        n_out = sum(self.write_vector)

        # reset_parameters(): xavier_uniform_(weight, gain=1.4); bias ~ N(0, 0.01)
        kw, kb = jax.random.split(key)
        bound = 1.4 * math.sqrt(6.0 / (ctrl_size + n_out))
        w = jax.random.uniform(kw, (n_out, ctrl_size), jnp.float32,
                               minval=-bound, maxval=bound)
        # stored transposed so the kernel does a plain (B,K)@(K,F) matmul
        self.w_fc_t = w.T                                       # (ctrl, 3M+6)
        self.b_fc = (0.01 * jax.random.normal(kb, (n_out,), jnp.float32)
                     ).reshape(1, n_out)                        # (1, 3M+6)

    def create_new_state(self, batch_size):
        return jnp.zeros((batch_size, self.N), jnp.float32)

    def is_read_head(self):
        return False

    def forward(self, x, last_w, memory):
        return write_head_forward(x, last_w, memory, self.w_fc_t, self.b_fc)


# -------------------------------- reference ----------------------------------

def _reference_forward(head, x, last_w, memory):
    out = jnp.dot(x, head.w_fc_t,
                  precision=jax.lax.Precision.HIGHEST) + head.b_fc
    return _address_and_write(out, last_w, memory, head.M)


# ----------------------------------- main -------------------------------------

if __name__ == "__main__":
    batch, N, M, ctrl_size = 8, 32, 16, 64   # memory: N=32 rows of width M=16

    key = jax.random.PRNGKey(0)
    kparam, kx, kmem = jax.random.split(key, 3)

    head = WriteHeadPallas(N, M, ctrl_size, kparam)

    x = jax.random.normal(kx, (batch, ctrl_size), jnp.float32)   # controller out
    last_w = head.create_new_state(batch)                        # zeros (B, N)
    memory = 0.05 * jax.random.normal(kmem, (batch, N, M), jnp.float32)

    w, mem_new = head.forward(x, last_w, memory)
    w = jax.block_until_ready(w)
    mem_new = jax.block_until_ready(mem_new)

    # sanity check against pure-jnp reference
    w_ref, mem_ref = _reference_forward(head, x, last_w, memory)
    assert w.shape == (batch, N)
    assert mem_new.shape == (batch, N, M)
    assert bool(jnp.allclose(w, w_ref, atol=1e-4, rtol=1e-4))
    assert bool(jnp.allclose(mem_new, mem_ref, atol=1e-4, rtol=1e-4))
    # write weights should be a distribution over the N memory rows
    assert bool(jnp.allclose(jnp.sum(w, axis=-1), jnp.ones((batch,)), atol=1e-4))

    print("KERNEL_OK")
</pallas_src>

<mosaic_0001>
module attributes {stable_mosaic.version = 11 : i64} {
  func.func @_write_head_kernel(%arg0: memref<8x64xf32, #tpu.memory_space<vmem>>, %arg1: memref<8x32xf32, #tpu.memory_space<vmem>>, %arg2: memref<8x32x16xf32, #tpu.memory_space<vmem>>, %arg3: memref<64x54xf32, #tpu.memory_space<vmem>>, %arg4: memref<1x54xf32, #tpu.memory_space<vmem>>, %arg5: memref<8x32xf32, #tpu.memory_space<vmem>>, %arg6: memref<8x32x16xf32, #tpu.memory_space<vmem>>) attributes {dimension_semantics = [], scalar_prefetch = 0 : i64, scratch_operands = 0 : i64, tpu.core_type = #tpu.core_type<tc>} {
    %c0 = arith.constant 0 : index
    %c0_0 = arith.constant 0 : index
    %0 = vector.load %arg0[%c0, %c0_0] : memref<8x64xf32, #tpu.memory_space<vmem>>, vector<8x64xf32>
    %c0_1 = arith.constant 0 : index
    %c0_2 = arith.constant 0 : index
    %1 = vector.load %arg3[%c0_1, %c0_2] : memref<64x54xf32, #tpu.memory_space<vmem>>, vector<64x54xf32>
    %cst = arith.constant dense<0.000000e+00> : vector<8x54xf32>
    %2 = tpu.matmul %0, %1, %cst {dimension_numbers = #tpu.dot_dimension_numbers<[1], [0], [0], [1], [0, 0, 1, 1], [], []>} : vector<8x64xf32>, vector<64x54xf32>, vector<8x54xf32> -> vector<8x54xf32>
    %c0_3 = arith.constant 0 : index
    %c0_4 = arith.constant 0 : index
    %3 = vector.load %arg4[%c0_3, %c0_4] : memref<1x54xf32, #tpu.memory_space<vmem>>, vector<1x54xf32>
    %4 = vector.broadcast %3 : vector<1x54xf32> to vector<8x54xf32>
    %5 = arith.addf %2, %4 : vector<8x54xf32>
    %c0_5 = arith.constant 0 : index
    %c0_6 = arith.constant 0 : index
    %6 = vector.load %arg1[%c0_5, %c0_6] : memref<8x32xf32, #tpu.memory_space<vmem>>, vector<8x32xf32>
    %c0_7 = arith.constant 0 : index
    %c0_8 = arith.constant 0 : index
    %c0_9 = arith.constant 0 : index
    %7 = vector.load %arg2[%c0_7, %c0_8, %c0_9] : memref<8x32x16xf32, #tpu.memory_space<vmem>>, vector<8x32x16xf32>
    %8 = vector.extract_strided_slice %5 {offsets = [0, 0], sizes = [8, 16], strides = [1, 1]} : vector<8x54xf32> to vector<8x16xf32>
    %9 = math.tanh %8 : vector<8x16xf32>
    %10 = vector.extract_strided_slice %5 {offsets = [0, 16], sizes = [8, 1], strides = [1, 1]} : vector<8x54xf32> to vector<8x1xf32>
    %cst_10 = arith.constant 0.000000e+00 : f32
    %11 = vector.broadcast %cst_10 : f32 to vector<8x1xf32>
    %12 = arith.maximumf %10, %11 : vector<8x1xf32>
    %13 = math.absf %10 : vector<8x1xf32>
    %cst_11 = arith.constant 0.000000e+00 : f32
    %14 = vector.broadcast %cst_11 : f32 to vector<8x1xf32>
    %15 = arith.subf %14, %13 : vector<8x1xf32>
    %16 = math.exp %15 : vector<8x1xf32>
    %cst_12 = arith.constant 1.000000e+00 : f32
    %17 = vector.broadcast %cst_12 : f32 to vector<8x1xf32>
    %18 = arith.addf %17, %16 : vector<8x1xf32>
    %19 = math.log %18 : vector<8x1xf32>
    %20 = arith.addf %12, %19 : vector<8x1xf32>
    %21 = vector.extract_strided_slice %5 {offsets = [0, 17], sizes = [8, 1], strides = [1, 1]} : vector<8x54xf32> to vector<8x1xf32>
    %cst_13 = arith.constant 5.000000e-01 : f32
    %22 = vector.broadcast %cst_13 : f32 to vector<8x1xf32>
    %23 = arith.mulf %22, %21 : vector<8x1xf32>
    %24 = math.tanh %23 : vector<8x1xf32>
    %cst_14 = arith.constant 1.000000e+00 : f32
    %25 = vector.broadcast %cst_14 : f32 to vector<8x1xf32>
    %26 = arith.addf %24, %25 : vector<8x1xf32>
    %cst_15 = arith.constant 5.000000e-01 : f32
    %27 = vector.broadcast %cst_15 : f32 to vector<8x1xf32>
    %28 = arith.mulf %27, %26 : vector<8x1xf32>
    %29 = vector.extract_strided_slice %5 {offsets = [0, 18], sizes = [8, 3], strides = [1, 1]} : vector<8x54xf32> to vector<8x3xf32>
    %cst_16 = arith.constant dense<0xFF800000> : vector<8xf32>
    %30 = vector.multi_reduction <maximumf>, %29, %cst_16 [1] : vector<8x3xf32> to vector<8xf32>
    %31 = vector.shape_cast %30 : vector<8xf32> to vector<8x1xf32>
    %32 = vector.broadcast %31 : vector<8x1xf32> to vector<8x3xf32>
    %33 = arith.subf %29, %32 : vector<8x3xf32>
    %34 = math.exp %33 : vector<8x3xf32>
    %cst_17 = arith.constant dense<0.000000e+00> : vector<8xf32>
    %35 = vector.multi_reduction <add>, %34, %cst_17 [1] : vector<8x3xf32> to vector<8xf32>
    %36 = vector.shape_cast %35 : vector<8xf32> to vector<8x1xf32>
    %37 = vector.broadcast %36 : vector<8x1xf32> to vector<8x3xf32>
    %38 = arith.divf %34, %37 : vector<8x3xf32>
    %39 = vector.extract_strided_slice %5 {offsets = [0, 21], sizes = [8, 1], strides = [1, 1]} : vector<8x54xf32> to vector<8x1xf32>
    %cst_18 = arith.constant 0.000000e+00 : f32
    %40 = vector.broadcast %cst_18 : f32 to vector<8x1xf32>
    %41 = arith.maximumf %39, %40 : vector<8x1xf32>
    %42 = math.absf %39 : vector<8x1xf32>
    %cst_19 = arith.constant 0.000000e+00 : f32
    %43 = vector.broadcast %cst_19 : f32 to vector<8x1xf32>
    %44 = arith.subf %43, %42 : vector<8x1xf32>
    %45 = math.exp %44 : vector<8x1xf32>
    %cst_20 = arith.constant 1.000000e+00 : f32
    %46 = vector.broadcast %cst_20 : f32 to vector<8x1xf32>
    %47 = arith.addf %46, %45 : vector<8x1xf32>
    %48 = math.log %47 : vector<8x1xf32>
    %49 = arith.addf %41, %48 : vector<8x1xf32>
    %cst_21 = arith.constant 1.000000e+00 : f32
    %50 = vector.broadcast %cst_21 : f32 to vector<8x1xf32>
    %51 = arith.addf %50, %49 : vector<8x1xf32>
    %52 = vector.extract_strided_slice %5 {offsets = [0, 22], sizes = [8, 16], strides = [1, 1]} : vector<8x54xf32> to vector<8x16xf32>
    %53 = math.tanh %52 : vector<8x16xf32>
    %54 = vector.extract_strided_slice %5 {offsets = [0, 38], sizes = [8, 16], strides = [1, 1]} : vector<8x54xf32> to vector<8x16xf32>
    %cst_22 = arith.constant 5.000000e-01 : f32
    %55 = vector.broadcast %cst_22 : f32 to vector<8x16xf32>
    %56 = arith.mulf %55, %54 : vector<8x16xf32>
    %57 = math.tanh %56 : vector<8x16xf32>
    %cst_23 = arith.constant 1.000000e+00 : f32
    %58 = vector.broadcast %cst_23 : f32 to vector<8x16xf32>
    %59 = arith.addf %57, %58 : vector<8x16xf32>
    %cst_24 = arith.constant 5.000000e-01 : f32
    %60 = vector.broadcast %cst_24 : f32 to vector<8x16xf32>
    %61 = arith.mulf %60, %59 : vector<8x16xf32>
    %cst_25 = arith.constant 1.000000e-16 : f32
    %62 = vector.broadcast %cst_25 : f32 to vector<8x32x16xf32>
    %63 = arith.addf %7, %62 : vector<8x32x16xf32>
    %cst_26 = arith.constant 1.000000e-16 : f32
    %64 = vector.broadcast %cst_26 : f32 to vector<8x16xf32>
    %65 = arith.addf %9, %64 : vector<8x16xf32>
    %66 = vector.shape_cast %65 : vector<8x16xf32> to vector<8x1x16xf32>
    %67 = vector.broadcast %66 : vector<8x1x16xf32> to vector<8x32x16xf32>
    %68 = arith.mulf %63, %67 : vector<8x32x16xf32>
    %cst_27 = arith.constant dense<0.000000e+00> : vector<8x32xf32>
    %69 = vector.multi_reduction <add>, %68, %cst_27 [2] : vector<8x32x16xf32> to vector<8x32xf32>
    %70 = arith.mulf %63, %63 : vector<8x32x16xf32>
    %cst_28 = arith.constant dense<0.000000e+00> : vector<8x32xf32>
    %71 = vector.multi_reduction <add>, %70, %cst_28 [2] : vector<8x32x16xf32> to vector<8x32xf32>
    %72 = math.sqrt %71 : vector<8x32xf32>
    %73 = arith.mulf %65, %65 : vector<8x16xf32>
    %cst_29 = arith.constant dense<0.000000e+00> : vector<8xf32>
    %74 = vector.multi_reduction <add>, %73, %cst_29 [1] : vector<8x16xf32> to vector<8xf32>
    %75 = vector.shape_cast %74 : vector<8xf32> to vector<8x1xf32>
    %76 = math.sqrt %75 : vector<8x1xf32>
    %cst_30 = arith.constant 9.99999993E-9 : f32
    %77 = vector.broadcast %cst_30 : f32 to vector<8x32xf32>
    %78 = arith.maximumf %72, %77 : vector<8x32xf32>
    %cst_31 = arith.constant 9.99999993E-9 : f32
    %79 = vector.broadcast %cst_31 : f32 to vector<8x1xf32>
    %80 = arith.maximumf %76, %79 : vector<8x1xf32>
    %81 = vector.broadcast %80 : vector<8x1xf32> to vector<8x32xf32>
    %82 = arith.mulf %78, %81 : vector<8x32xf32>
    %83 = arith.divf %69, %82 : vector<8x32xf32>
    %84 = vector.broadcast %20 : vector<8x1xf32> to vector<8x32xf32>
    %85 = arith.mulf %84, %83 : vector<8x32xf32>
    %cst_32 = arith.constant dense<0xFF800000> : vector<8xf32>
    %86 = vector.multi_reduction <maximumf>, %85, %cst_32 [1] : vector<8x32xf32> to vector<8xf32>
    %87 = vector.shape_cast %86 : vector<8xf32> to vector<8x1xf32>
    %88 = vector.broadcast %87 : vector<8x1xf32> to vector<8x32xf32>
    %89 = arith.subf %85, %88 : vector<8x32xf32>
    %90 = math.exp %89 : vector<8x32xf32>
    %cst_33 = arith.constant dense<0.000000e+00> : vector<8xf32>
    %91 = vector.multi_reduction <add>, %90, %cst_33 [1] : vector<8x32xf32> to vector<8xf32>
    %92 = vector.shape_cast %91 : vector<8xf32> to vector<8x1xf32>
    %93 = vector.broadcast %92 : vector<8x1xf32> to vector<8x32xf32>
    %94 = arith.divf %90, %93 : vector<8x32xf32>
    %95 = vector.broadcast %28 : vector<8x1xf32> to vector<8x32xf32>
    %96 = arith.mulf %95, %94 : vector<8x32xf32>
    %cst_34 = arith.constant 1.000000e+00 : f32
    %97 = vector.broadcast %cst_34 : f32 to vector<8x1xf32>
    %98 = arith.subf %97, %28 : vector<8x1xf32>
    %99 = vector.broadcast %98 : vector<8x1xf32> to vector<8x32xf32>
    %100 = arith.mulf %99, %6 : vector<8x32xf32>
    %101 = arith.addf %96, %100 : vector<8x32xf32>
    %102 = vector.extract_strided_slice %38 {offsets = [0, 0], sizes = [8, 1], strides = [1, 1]} : vector<8x3xf32> to vector<8x1xf32>
    %103 = vector.extract_strided_slice %101 {offsets = [0, 31], sizes = [8, 1], strides = [1, 1]} : vector<8x32xf32> to vector<8x1xf32>
    %104 = vector.extract_strided_slice %101 {offsets = [0, 0], sizes = [8, 31], strides = [1, 1]} : vector<8x32xf32> to vector<8x31xf32>
    %105 = tpu.concatenate %103, %104 in 1 : vector<8x1xf32>, vector<8x31xf32> -> vector<8x32xf32>
    %106 = vector.broadcast %102 : vector<8x1xf32> to vector<8x32xf32>
    %107 = arith.mulf %106, %105 : vector<8x32xf32>
    %108 = vector.extract_strided_slice %38 {offsets = [0, 1], sizes = [8, 1], strides = [1, 1]} : vector<8x3xf32> to vector<8x1xf32>
    %109 = vector.broadcast %108 : vector<8x1xf32> to vector<8x32xf32>
    %110 = arith.mulf %109, %101 : vector<8x32xf32>
    %111 = arith.addf %107, %110 : vector<8x32xf32>
    %112 = vector.extract_strided_slice %38 {offsets = [0, 2], sizes = [8, 1], strides = [1, 1]} : vector<8x3xf32> to vector<8x1xf32>
    %113 = vector.extract_strided_slice %101 {offsets = [0, 1], sizes = [8, 31], strides = [1, 1]} : vector<8x32xf32> to vector<8x31xf32>
    %114 = vector.extract_strided_slice %101 {offsets = [0, 0], sizes = [8, 1], strides = [1, 1]} : vector<8x32xf32> to vector<8x1xf32>
    %115 = tpu.concatenate %113, %114 in 1 : vector<8x31xf32>, vector<8x1xf32> -> vector<8x32xf32>
    %116 = vector.broadcast %112 : vector<8x1xf32> to vector<8x32xf32>
    %117 = arith.mulf %116, %115 : vector<8x32xf32>
    %118 = arith.addf %111, %117 : vector<8x32xf32>
    %cst_35 = arith.constant 1.000000e-30 : f32
    %119 = vector.broadcast %cst_35 : f32 to vector<8x32xf32>
    %120 = arith.maximumf %118, %119 : vector<8x32xf32>
    %121 = math.log %120 : vector<8x32xf32>
    %122 = vector.broadcast %51 : vector<8x1xf32> to vector<8x32xf32>
    %123 = arith.mulf %122, %121 : vector<8x32xf32>
    %124 = math.exp %123 : vector<8x32xf32>
    %cst_36 = arith.constant dense<0.000000e+00> : vector<8xf32>
    %125 = vector.multi_reduction <add>, %124, %cst_36 [1] : vector<8x32xf32> to vector<8xf32>
    %126 = vector.shape_cast %125 : vector<8xf32> to vector<8x1xf32>
    %cst_37 = arith.constant 1.000000e-16 : f32
    %127 = vector.broadcast %cst_37 : f32 to vector<8x1xf32>
    %128 = arith.addf %126, %127 : vector<8x1xf32>
    %129 = vector.broadcast %128 : vector<8x1xf32> to vector<8x32xf32>
    %130 = arith.divf %124, %129 : vector<8x32xf32>
    %131 = vector.shape_cast %130 : vector<8x32xf32> to vector<8x32x1xf32>
    %132 = vector.shape_cast %61 : vector<8x16xf32> to vector<8x1x16xf32>
    %133 = vector.broadcast %131 : vector<8x32x1xf32> to vector<8x32x16xf32>
    %134 = vector.broadcast %132 : vector<8x1x16xf32> to vector<8x32x16xf32>
    %135 = arith.mulf %133, %134 : vector<8x32x16xf32>
    %136 = vector.shape_cast %130 : vector<8x32xf32> to vector<8x32x1xf32>
    %137 = vector.shape_cast %53 : vector<8x16xf32> to vector<8x1x16xf32>
    %138 = vector.broadcast %136 : vector<8x32x1xf32> to vector<8x32x16xf32>
    %139 = vector.broadcast %137 : vector<8x1x16xf32> to vector<8x32x16xf32>
    %140 = arith.mulf %138, %139 : vector<8x32x16xf32>
    %cst_38 = arith.constant 1.000000e+00 : f32
    %141 = vector.broadcast %cst_38 : f32 to vector<8x32x16xf32>
    %142 = arith.subf %141, %135 : vector<8x32x16xf32>
    %143 = arith.mulf %7, %142 : vector<8x32x16xf32>
    %144 = arith.addf %143, %140 : vector<8x32x16xf32>
    %c0_39 = arith.constant 0 : index
    %c0_40 = arith.constant 0 : index
    %145 = vector.load %arg5[%c0_39, %c0_40] : memref<8x32xf32, #tpu.memory_space<vmem>>, vector<8x32xf32>
    tpu.vector_store %arg5[%c0_39, %c0_40], %130 {strides = array<i32>} : memref<8x32xf32, #tpu.memory_space<vmem>>, vector<8x32xf32>,
    %c0_41 = arith.constant 0 : index
    %c0_42 = arith.constant 0 : index
    %c0_43 = arith.constant 0 : index
    %146 = vector.load %arg6[%c0_41, %c0_42, %c0_43] : memref<8x32x16xf32, #tpu.memory_space<vmem>>, vector<8x32x16xf32>
    tpu.vector_store %arg6[%c0_41, %c0_42, %c0_43], %144 {strides = array<i32>} : memref<8x32x16xf32, #tpu.memory_space<vmem>>, vector<8x32x16xf32>,
    return
  }
}

</mosaic_0001>

<llo_original>
// kernel: tpu_custom_call.1
$region0: #{tpu_custom_call.1}
  #allocation0 [shape = 'u32[]', space=smem, size = 0x4, offset = 0x4, fixed_abs, tag = 'smem constant byte address 0x4 - core index']
  #allocation1 [shape = 'u32[144,128]{1,0:T(1,128)}', space=vmem, size = 0x12000, scoped, tag = 'internal scratch']
  %s0 = inlined_call_operand.vmem [shape: f32[8,64], index: 0, kind: input, shape index: {}]
  %s1 = inlined_call_operand.vmem [shape: f32[8,32], index: 1, kind: input, shape index: {}]
  %s2 = inlined_call_operand.vmem [shape: f32[8,32,16], index: 2, kind: input, shape index: {}]
  %s3 = inlined_call_operand.vmem [shape: f32[64,54], index: 3, kind: input, shape index: {}]
  %s4 = inlined_call_operand.vmem [shape: f32[1,54], index: 4, kind: input, shape index: {}]
  %s5 = inlined_call_operand.hbm [shape: f32[8,32], index: 5, kind: output, shape index: {0}]
  %s6 = inlined_call_operand.vmem [shape: f32[8,32,16], index: 6, kind: output, shape index: {1}]
  %7 = xla_tuple %s5, %s6
  %s8 = sld [smem:[#allocation0]]
  $region38: #{tpu_custom_call.1} parent=0
    _
  %s10 = ssub.s32 1, %s8
  %s11 = scalar_select 0, %s10, %s8
  $region1: #{tpu_custom_call.1} parent=0
    #allocation2 [shape = 'u8[4096]{0}', space=vmem, size = 0x1000, scoped, tag = 'output window, operand 0, single buffered']
    #allocation3 [shape = 's32[1]{0}', space=sflag, size = 0x4, scoped, tag = 'scoped memory for tpu_custom_call.1']
    %12 = vsyncpa [#allocation3], 0
    // Predicated region
    $region2: #{tpu_custom_call.1} parent=1 // pred_check
      _
    $region3: #{tpu_custom_call.1} parent=1 // pred_check_branch
      %14 = sbr.rel (0) target = $region5
    $region4: #{tpu_custom_call.1} parent=1 // pred_region
      _
    $region5: #{tpu_custom_call.1} parent=1 // pred_fallthru
      _
    // Predicated region
    $region6: #{tpu_custom_call.1} parent=1 // pred_check
      _
    $region7: #{tpu_custom_call.1} parent=1 // pred_check_branch
      %16 = sbr.rel (0) target = $region9
    $region8: #{tpu_custom_call.1} parent=1 // pred_region
      _
    $region9: #{tpu_custom_call.1} parent=1 // pred_fallthru
      _
    // Predicated region
    $region10: #{tpu_custom_call.1} parent=1 // pred_check
      _
    $region11: #{tpu_custom_call.1} parent=1 // pred_check_branch
      %18 = sbr.rel (0) target = $region13
    $region12: #{tpu_custom_call.1} parent=1 // pred_region
      _
    $region13: #{tpu_custom_call.1} parent=1 // pred_fallthru
      _
    // Predicated region
    $region14: #{tpu_custom_call.1} parent=1 // pred_check
      _
    $region15: #{tpu_custom_call.1} parent=1 // pred_check_branch
      %20 = sbr.rel (0) target = $region17
    $region16: #{tpu_custom_call.1} parent=1 // pred_region
      _
    $region17: #{tpu_custom_call.1} parent=1 // pred_fallthru
      _
    // Predicated region
    $region18: #{tpu_custom_call.1} parent=1 // pred_check
      _
    $region19: #{tpu_custom_call.1} parent=1 // pred_check_branch
      %22 = sbr.rel (0) target = $region21
    $region20: #{tpu_custom_call.1} parent=1 // pred_region
      _
    $region21: #{tpu_custom_call.1} parent=1 // pred_fallthru
      _
    %v23 = vld [vmem:[%s0] sm:$0xff]
    %v24 = vld [vmem:[%s3] sm:$0xff]
    %v25 = vld [vmem:[%s3 + $0x8] sm:$0xff]
    %v26 = vld [vmem:[%s3 + $0x10] sm:$0xff]
    %v27 = vld [vmem:[%s3 + $0x18] sm:$0xff]
    %v28 = vld [vmem:[%s3 + $0x20] sm:$0xff]
    %v29 = vld [vmem:[%s3 + $0x28] sm:$0xff]
    %v30 = vld [vmem:[%s3 + $0x30] sm:$0xff]
    %v31 = vld [vmem:[%s3 + $0x38] sm:$0xff]
    %v32 = vld [vmem:[%s4] sm:$0x1]
    %v34 = vlaneseq
    %v35 = vshrl.u32 %v34, 7
    %v36 = vsub.s32 0, %v35
    %v37 = vrot.slane %v32, %v36
    %vm39 = vcmask 523264
    %v41 = vsel %vm39, %v23, 0
    %43 = vmatprep.subr.mxu0 0.0
    %44 = vmatpush1.msra.mxu0 %v24
    %45 = vmatprep.subr.mxu0 0.0
    %46 = vmatpush1.msra.mxu0 %v25
    %47 = vmatprep.subr.mxu0 0.0
    %48 = vmatpush1.msra.mxu0 %v26
    %49 = vmatprep.subr.mxu0 0.0
    %50 = vmatpush1.msra.mxu0 %v27
    %51 = vmatprep.subr.mxu0 0.0
    %52 = vmatpush1.msra.mxu0 %v28
    %53 = vmatprep.subr.mxu0 0.0
    %54 = vmatpush1.msra.mxu0 %v29
    %55 = vmatprep.subr.mxu0 0.0
    %56 = vmatpush1.msra.mxu0 %v30
    %57 = vmatprep.subr.mxu0 0.0
    %58 = vmatpush1.msra.mxu0 %v31
    %59 = vmatprep.subr.mxu0 0.0
    %60 = vmatpush1.msra.mxu0 0.0
    %61 = vmatprep.subr.mxu0 0.0
    %62 = vmatpush1.msra.mxu0 0.0
    %63 = vmatprep.subr.mxu0 0.0
    %64 = vmatpush1.msra.mxu0 0.0
    %65 = vmatprep.subr.mxu0 0.0
    %66 = vmatpush1.msra.mxu0 0.0
    %67 = vmatprep.subr.mxu0 0.0
    %68 = vmatpush1.msra.mxu0 0.0
    %69 = vmatprep.subr.mxu0 0.0
    %70 = vmatpush1.msra.mxu0 0.0
    %71 = vmatprep.subr.mxu0 0.0
    %72 = vmatpush1.msra.mxu0 0.0
    %73 = vmatprep.subr.mxu0 0.0
    %74 = vmatpush1.msra.mxu0 0.0
    %75 = vmatprep.subr.mxu0 0.0
    %76 = vmatpush1.msra.mxu0 0.0
    %77 = vmatprep.subr.mxu0 0.0
    %78 = vmatpush1.msra.mxu0 0.0
    %79 = vmatprep.subr.mxu0 0.0
    %80 = vmatpush1.msra.mxu0 0.0
    %81 = vmatprep.subr.mxu0 0.0
    %82 = vmatpush1.msra.mxu0 0.0
    %83 = vmatprep.subr.mxu0 0.0
    %84 = vmatpush1.msra.mxu0 0.0
    %85 = vmatprep.subr.mxu0 0.0
    %86 = vmatpush1.msra.mxu0 0.0
    %87 = vmatprep.subr.mxu0 0.0
    %88 = vmatpush1.msra.mxu0 0.0
    %89 = vmatprep.subr.mxu0 0.0
    %90 = vmatpush1.msra.mxu0 0.0
    %91 = vmatprep.subr.mxu0 0.0
    %92 = vmatpush1.msra.mxu0 0.0
    %93 = vmatprep.subr.mxu0 0.0
    %94 = vmatpush1.msra.mxu0 0.0
    %95 = vmatprep.subr.mxu0 0.0
    %96 = vmatpush1.msra.mxu0 0.0
    %97 = vmatprep.subr.mxu0 0.0
    %98 = vmatpush1.msra.mxu0 0.0
    %99 = vmatprep.subr.mxu0 0.0
    %100 = vmatpush1.msra.mxu0 0.0
    %101 = vmatprep.subr.mxu0 0.0
    %102 = vmatpush1.msra.mxu0 0.0
    %103 = vmatprep.subr.mxu0 0.0
    %104 = vmatpush1.msra.mxu0 0.0
    %105 = vmatprep.subr.mxu0 0.0
    %106 = vmatpush1.msra.mxu0 0.0
    %107 = vmatprep.mubr.f32.mxu0 0.0
    %108 = vmatmul.mubr.f32.gmra.mrb[0].mxu0 %v41
    %v109 = vpop.f32.mrb[0].mxu0
    %v110 = vadd.f32 %v37, %v109
    %v111 = vpop.f32.mrb[0].mxu0
    %112 = vdwg.mxu0
    %v113 = vld [vmem:[%s1] sm:$0xff]
    %v114 = vld [vmem:[%s2] sm:$0xff]
    %v115 = vld [vmem:[%s2 + $0x8] sm:$0xff]
    %v116 = vld [vmem:[%s2 + $0x10] sm:$0xff]
    %v117 = vld [vmem:[%s2 + $0x18] sm:$0xff]
    %v118 = vld [vmem:[%s2 + $0x20] sm:$0xff]
    %v119 = vld [vmem:[%s2 + $0x28] sm:$0xff]
    %v120 = vld [vmem:[%s2 + $0x30] sm:$0xff]
    %v121 = vld [vmem:[%s2 + $0x38] sm:$0xff]
    %v122 = vld [vmem:[%s2 + $0x40] sm:$0xff]
    %v123 = vld [vmem:[%s2 + $0x48] sm:$0xff]
    %v124 = vld [vmem:[%s2 + $0x50] sm:$0xff]
    %v125 = vld [vmem:[%s2 + $0x58] sm:$0xff]
    %v126 = vld [vmem:[%s2 + $0x60] sm:$0xff]
    %v127 = vld [vmem:[%s2 + $0x68] sm:$0xff]
    %v128 = vld [vmem:[%s2 + $0x70] sm:$0xff]
    %v129 = vld [vmem:[%s2 + $0x78] sm:$0xff]
    %v130 = vld [vmem:[%s2 + $0x80] sm:$0xff]
    %v131 = vld [vmem:[%s2 + $0x88] sm:$0xff]
    %v132 = vld [vmem:[%s2 + $0x90] sm:$0xff]
    %v133 = vld [vmem:[%s2 + $0x98] sm:$0xff]
    %v134 = vld [vmem:[%s2 + $0xa0] sm:$0xff]
    %v135 = vld [vmem:[%s2 + $0xa8] sm:$0xff]
    %v136 = vld [vmem:[%s2 + $0xb0] sm:$0xff]
    %v137 = vld [vmem:[%s2 + $0xb8] sm:$0xff]
    %v138 = vld [vmem:[%s2 + $0xc0] sm:$0xff]
    %v139 = vld [vmem:[%s2 + $0xc8] sm:$0xff]
    %v140 = vld [vmem:[%s2 + $0xd0] sm:$0xff]
    %v141 = vld [vmem:[%s2 + $0xd8] sm:$0xff]
    %v142 = vld [vmem:[%s2 + $0xe0] sm:$0xff]
    %v143 = vld [vmem:[%s2 + $0xe8] sm:$0xff]
    %v144 = vld [vmem:[%s2 + $0xf0] sm:$0xff]
    %v145 = vld [vmem:[%s2 + $0xf8] sm:$0xff]
    %v146 = vtanh.pop %v110
    %v147 = vmax.f32 %v110, 0.0
    %v148 = vand.u32 2147483647, %v110
    %v149 = vsub.f32 0.0, %v148
    %v150 = vmul.f32 %v149, 1.442695
    %v151 = vpow.pop %v150
    %v152 = vadd.f32 %v151, 1.0
    %v153 = vlog2.pop %v152
    %v154 = vmul.f32 %v153, 0.6931472
    %v155 = vadd.f32 %v147, %v154
    %v156 = vmul.f32 %v110, 0.5
    %v157 = vtanh.pop %v156
    %v158 = vadd.f32 %v157, 1.0
    %v159 = vmul.f32 %v158, 0.5
    %vm160 = vcmask 171152
    %v161 = vsel %vm160, %v110, -inf
    %162 = vmax.xlane.f32.xlu0 %v161
    %v163 = vpop.xlane.xlu0 %162
    %v164 = vsub.f32 %v110, %v163
    %v165 = vmul.f32 %v164, 1.442695
    %v166 = vpow.pop %v165
    %168 = vrot.lane.b32.xlu0 %v166, 110
    %v169 = vpop.permute.xlu0 %168
    %vm171 = vcmask 23552
    %v172 = vsel %vm171, %v169, 0.0
    %173 = vadd.xlane.f32.xlu0 %v172
    %v174 = vpop.xlane.xlu0 %173
    %v175 = vrcp.pop %v174
    %v176 = vmul.f32 %v166, %v175
    %v177 = vadd.f32 %v155, 1.0
    %v178 = vadd.f32 %v114, 1e-16
    %v179 = vadd.f32 %v115, 1e-16
    %v180 = vadd.f32 %v116, 1e-16
    %v181 = vadd.f32 %v117, 1e-16
    %v182 = vadd.f32 %v118, 1e-16
    %v183 = vadd.f32 %v119, 1e-16
    %v184 = vadd.f32 %v120, 1e-16
    %v185 = vadd.f32 %v121, 1e-16
    %v186 = vadd.f32 %v122, 1e-16
    %v187 = vadd.f32 %v123, 1e-16
    %v188 = vadd.f32 %v124, 1e-16
    %v189 = vadd.f32 %v125, 1e-16
    %v190 = vadd.f32 %v126, 1e-16
    %v191 = vadd.f32 %v127, 1e-16
    %v192 = vadd.f32 %v128, 1e-16
    %v193 = vadd.f32 %v129, 1e-16
    %v194 = vadd.f32 %v130, 1e-16
    %v195 = vadd.f32 %v131, 1e-16
    %v196 = vadd.f32 %v132, 1e-16
    %v197 = vadd.f32 %v133, 1e-16
    %v198 = vadd.f32 %v134, 1e-16
    %v199 = vadd.f32 %v135, 1e-16
    %v200 = vadd.f32 %v136, 1e-16
    %v201 = vadd.f32 %v137, 1e-16
    %v202 = vadd.f32 %v138, 1e-16
    %v203 = vadd.f32 %v139, 1e-16
    %v204 = vadd.f32 %v140, 1e-16
    %v205 = vadd.f32 %v141, 1e-16
    %v206 = vadd.f32 %v142, 1e-16
    %v207 = vadd.f32 %v143, 1e-16
    %v208 = vadd.f32 %v144, 1e-16
    %v209 = vadd.f32 %v145, 1e-16
    %v210 = vadd.f32 %v146, 1e-16
    %v212 = vcombine.high %v210, %v210
    %v214 = vunpack.c.l.s4 1966171168
    %v215 = vunpack.c.0.s8 %v214
    %v216 = vlaneseq
    %v217 = vshrl.u32 %v216, 7
    %v218 = vsub.s32 %v215, %v217
    %v219 = vrot.slane %v210, %v218
    %v221 = vunpack.c.l.s4 1966171168
    %v222 = vunpack.c.0.s8 %v221
    %v223 = vlaneseq
    %v224 = vshrl.u32 %v223, 7
    %v225 = vsub.s32 %v222, %v224
    %v226 = vrot.slane %v212, %v225
    %v227 = vcombine.high %v219, %v219
    %v228 = vcombine.high %v226, %v226
    %v230 = vunpack.c.l.s4 1966171168
    %v231 = vunpack.c.0.s8 %v230
    %v232 = vlaneseq
    %v233 = vshrl.u32 %v232, 7
    %v234 = vsub.s32 %v231, %v233
    %v235 = vrot.slane %v219, %v234
    %v237 = vunpack.c.l.s4 1966171168
    %v238 = vunpack.c.0.s8 %v237
    %v239 = vlaneseq
    %v240 = vshrl.u32 %v239, 7
    %v241 = vsub.s32 %v238, %v240
    %v242 = vrot.slane %v226, %v241
    %v244 = vunpack.c.l.s4 1966171168
    %v245 = vunpack.c.0.s8 %v244
    %v246 = vlaneseq
    %v247 = vshrl.u32 %v246, 7
    %v248 = vsub.s32 %v245, %v247
    %v249 = vrot.slane %v227, %v248
    %v251 = vunpack.c.l.s4 1966171168
    %v252 = vunpack.c.0.s8 %v251
    %v253 = vlaneseq
    %v254 = vshrl.u32 %v253, 7
    %v255 = vsub.s32 %v252, %v254
    %v256 = vrot.slane %v228, %v255
    %v257 = vcombine.high %v235, %v235
    %v258 = vcombine.high %v242, %v242
    %v259 = vcombine.high %v249, %v249
    %v260 = vcombine.high %v256, %v256
    %v261 = vlaneseq
    %v262 = vshrl.u32 %v261, 7
    %v263 = vsub.s32 0, %v262
    %v264 = vrot.slane %v235, %v263
    %v265 = vlaneseq
    %v266 = vshrl.u32 %v265, 7
    %v267 = vsub.s32 0, %v266
    %v268 = vrot.slane %v249, %v267
    %v269 = vlaneseq
    %v270 = vshrl.u32 %v269, 7
    %v271 = vsub.s32 0, %v270
    %v272 = vrot.slane %v257, %v271
    %v273 = vlaneseq
    %v274 = vshrl.u32 %v273, 7
    %v275 = vsub.s32 0, %v274
    %v276 = vrot.slane %v259, %v275
    %v277 = vlaneseq
    %v278 = vshrl.u32 %v277, 7
    %v279 = vsub.s32 0, %v278
    %v280 = vrot.slane %v242, %v279
    %v281 = vlaneseq
    %v282 = vshrl.u32 %v281, 7
    %v283 = vsub.s32 0, %v282
    %v284 = vrot.slane %v256, %v283
    %v285 = vlaneseq
    %v286 = vshrl.u32 %v285, 7
    %v287 = vsub.s32 0, %v286
    %v288 = vrot.slane %v258, %v287
    %v289 = vlaneseq
    %v290 = vshrl.u32 %v289, 7
    %v291 = vsub.s32 0, %v290
    %v292 = vrot.slane %v260, %v291
    %v301 = vmul.f32 %v178, %v264
    %v302 = vmul.f32 %v179, %v264
    %v303 = vmul.f32 %v180, %v264
    %v304 = vmul.f32 %v181, %v264
    %v305 = vmul.f32 %v182, %v268
    %v306 = vmul.f32 %v183, %v268
    %v307 = vmul.f32 %v184, %v268
    %v308 = vmul.f32 %v185, %v268
    %v309 = vmul.f32 %v186, %v272
    %v310 = vmul.f32 %v187, %v272
    %v311 = vmul.f32 %v188, %v272
    %v312 = vmul.f32 %v189, %v272
    %v313 = vmul.f32 %v190, %v276
    %v314 = vmul.f32 %v191, %v276
    %v315 = vmul.f32 %v192, %v276
    %v316 = vmul.f32 %v193, %v276
    %v317 = vmul.f32 %v194, %v280
    %v318 = vmul.f32 %v195, %v280
    %v319 = vmul.f32 %v196, %v280
    %v320 = vmul.f32 %v197, %v280
    %v321 = vmul.f32 %v198, %v284
    %v322 = vmul.f32 %v199, %v284
    %v323 = vmul.f32 %v200, %v284
    %v324 = vmul.f32 %v201, %v284
    %v325 = vmul.f32 %v202, %v288
    %v326 = vmul.f32 %v203, %v288
    %v327 = vmul.f32 %v204, %v288
    %v328 = vmul.f32 %v205, %v288
    %v329 = vmul.f32 %v206, %v292
    %v330 = vmul.f32 %v207, %v292
    %v331 = vmul.f32 %v208, %v292
    %v332 = vmul.f32 %v209, %v292
    %vm333 = vcmask 130048
    %v334 = vsel %vm333, %v301, 0.0
    %335 = vadd.xlane.f32.xlu0 %v334
    %v336 = vpop.xlane.xlu0 %335
    %v337 = vsel %vm333, %v302, 0.0
    %338 = vadd.xlane.f32.xlu0 %v337
    %v339 = vpop.xlane.xlu0 %338
    %v340 = vsel %vm333, %v303, 0.0
    %341 = vadd.xlane.f32.xlu0 %v340
    %v342 = vpop.xlane.xlu0 %341
    %v343 = vsel %vm333, %v304, 0.0
    %344 = vadd.xlane.f32.xlu0 %v343
    %v345 = vpop.xlane.xlu0 %344
    %v346 = vsel %vm333, %v305, 0.0
    %347 = vadd.xlane.f32.xlu0 %v346
    %v348 = vpop.xlane.xlu0 %347
    %v349 = vsel %vm333, %v306, 0.0
    %350 = vadd.xlane.f32.xlu0 %v349
    %v351 = vpop.xlane.xlu0 %350
    %v352 = vsel %vm333, %v307, 0.0
    %353 = vadd.xlane.f32.xlu0 %v352
    %v354 = vpop.xlane.xlu0 %353
    %v355 = vsel %vm333, %v308, 0.0
    %356 = vadd.xlane.f32.xlu0 %v355
    %v357 = vpop.xlane.xlu0 %356
    %v358 = vsel %vm333, %v309, 0.0
    %359 = vadd.xlane.f32.xlu0 %v358
    %v360 = vpop.xlane.xlu0 %359
    %v361 = vsel %vm333, %v310, 0.0
    %362 = vadd.xlane.f32.xlu0 %v361
    %v363 = vpop.xlane.xlu0 %362
    %v364 = vsel %vm333, %v311, 0.0
    %365 = vadd.xlane.f32.xlu0 %v364
    %v366 = vpop.xlane.xlu0 %365
    %v367 = vsel %vm333, %v312, 0.0
    %368 = vadd.xlane.f32.xlu0 %v367
    %v369 = vpop.xlane.xlu0 %368
    %v370 = vsel %vm333, %v313, 0.0
    %371 = vadd.xlane.f32.xlu0 %v370
    %v372 = vpop.xlane.xlu0 %371
    %v373 = vsel %vm333, %v314, 0.0
    %374 = vadd.xlane.f32.xlu0 %v373
    %v375 = vpop.xlane.xlu0 %374
    %v376 = vsel %vm333, %v315, 0.0
    %377 = vadd.xlane.f32.xlu0 %v376
    %v378 = vpop.xlane.xlu0 %377
    %v379 = vsel %vm333, %v316, 0.0
    %380 = vadd.xlane.f32.xlu0 %v379
    %v381 = vpop.xlane.xlu0 %380
    %v382 = vsel %vm333, %v317, 0.0
    %383 = vadd.xlane.f32.xlu0 %v382
    %v384 = vpop.xlane.xlu0 %383
    %v385 = vsel %vm333, %v318, 0.0
    %386 = vadd.xlane.f32.xlu0 %v385
    %v387 = vpop.xlane.xlu0 %386
    %v388 = vsel %vm333, %v319, 0.0
    %389 = vadd.xlane.f32.xlu0 %v388
    %v390 = vpop.xlane.xlu0 %389
    %v391 = vsel %vm333, %v320, 0.0
    %392 = vadd.xlane.f32.xlu0 %v391
    %v393 = vpop.xlane.xlu0 %392
    %v394 = vsel %vm333, %v321, 0.0
    %395 = vadd.xlane.f32.xlu0 %v394
    %v396 = vpop.xlane.xlu0 %395
    %v397 = vsel %vm333, %v322, 0.0
    %398 = vadd.xlane.f32.xlu0 %v397
    %v399 = vpop.xlane.xlu0 %398
    %v400 = vsel %vm333, %v323, 0.0
    %401 = vadd.xlane.f32.xlu0 %v400
    %v402 = vpop.xlane.xlu0 %401
    %v403 = vsel %vm333, %v324, 0.0
    %404 = vadd.xlane.f32.xlu0 %v403
    %v405 = vpop.xlane.xlu0 %404
    %v406 = vsel %vm333, %v325, 0.0
    %407 = vadd.xlane.f32.xlu0 %v406
    %v408 = vpop.xlane.xlu0 %407
    %v409 = vsel %vm333, %v326, 0.0
    %410 = vadd.xlane.f32.xlu0 %v409
    %v411 = vpop.xlane.xlu0 %410
    %v412 = vsel %vm333, %v327, 0.0
    %413 = vadd.xlane.f32.xlu0 %v412
    %v414 = vpop.xlane.xlu0 %413
    %v415 = vsel %vm333, %v328, 0.0
    %416 = vadd.xlane.f32.xlu0 %v415
    %v417 = vpop.xlane.xlu0 %416
    %v418 = vsel %vm333, %v329, 0.0
    %419 = vadd.xlane.f32.xlu0 %v418
    %v420 = vpop.xlane.xlu0 %419
    %v421 = vsel %vm333, %v330, 0.0
    %422 = vadd.xlane.f32.xlu0 %v421
    %v423 = vpop.xlane.xlu0 %422
    %v424 = vsel %vm333, %v331, 0.0
    %425 = vadd.xlane.f32.xlu0 %v424
    %v426 = vpop.xlane.xlu0 %425
    %v427 = vsel %vm333, %v332, 0.0
    %428 = vadd.xlane.f32.xlu0 %v427
    %v429 = vpop.xlane.xlu0 %428
    %v430 = vmul.f32 %v178, %v178
    %v431 = vmul.f32 %v179, %v179
    %v432 = vmul.f32 %v180, %v180
    %v433 = vmul.f32 %v181, %v181
    %v434 = vmul.f32 %v182, %v182
    %v435 = vmul.f32 %v183, %v183
    %v436 = vmul.f32 %v184, %v184
    %v437 = vmul.f32 %v185, %v185
    %v438 = vmul.f32 %v186, %v186
    %v439 = vmul.f32 %v187, %v187
    %v440 = vmul.f32 %v188, %v188
    %v441 = vmul.f32 %v189, %v189
    %v442 = vmul.f32 %v190, %v190
    %v443 = vmul.f32 %v191, %v191
    %v444 = vmul.f32 %v192, %v192
    %v445 = vmul.f32 %v193, %v193
    %v446 = vmul.f32 %v194, %v194
    %v447 = vmul.f32 %v195, %v195
    %v448 = vmul.f32 %v196, %v196
    %v449 = vmul.f32 %v197, %v197
    %v450 = vmul.f32 %v198, %v198
    %v451 = vmul.f32 %v199, %v199
    %v452 = vmul.f32 %v200, %v200
    %v453 = vmul.f32 %v201, %v201
    %v454 = vmul.f32 %v202, %v202
    %v455 = vmul.f32 %v203, %v203
    %v456 = vmul.f32 %v204, %v204
    %v457 = vmul.f32 %v205, %v205
    %v458 = vmul.f32 %v206, %v206
    %v459 = vmul.f32 %v207, %v207
    %v460 = vmul.f32 %v208, %v208
    %v461 = vmul.f32 %v209, %v209
    %v462 = vsel %vm333, %v430, 0.0
    %463 = vadd.xlane.f32.xlu0 %v462
    %v464 = vpop.xlane.xlu0 %463
    %v465 = vsel %vm333, %v431, 0.0
    %466 = vadd.xlane.f32.xlu0 %v465
    %v467 = vpop.xlane.xlu0 %466
    %v468 = vsel %vm333, %v432, 0.0
    %469 = vadd.xlane.f32.xlu0 %v468
    %v470 = vpop.xlane.xlu0 %469
    %v471 = vsel %vm333, %v433, 0.0
    %472 = vadd.xlane.f32.xlu0 %v471
    %v473 = vpop.xlane.xlu0 %472
    %v474 = vsel %vm333, %v434, 0.0
    %475 = vadd.xlane.f32.xlu0 %v474
    %v476 = vpop.xlane.xlu0 %475
    %v477 = vsel %vm333, %v435, 0.0
    %478 = vadd.xlane.f32.xlu0 %v477
    %v479 = vpop.xlane.xlu0 %478
    %v480 = vsel %vm333, %v436, 0.0
    %481 = vadd.xlane.f32.xlu0 %v480
    %v482 = vpop.xlane.xlu0 %481
    %v483 = vsel %vm333, %v437, 0.0
    %484 = vadd.xlane.f32.xlu0 %v483
    %v485 = vpop.xlane.xlu0 %484
    %v486 = vsel %vm333, %v438, 0.0
    %487 = vadd.xlane.f32.xlu0 %v486
    %v488 = vpop.xlane.xlu0 %487
    %v489 = vsel %vm333, %v439, 0.0
    %490 = vadd.xlane.f32.xlu0 %v489
    %v491 = vpop.xlane.xlu0 %490
    %v492 = vsel %vm333, %v440, 0.0
    %493 = vadd.xlane.f32.xlu0 %v492
    %v494 = vpop.xlane.xlu0 %493
    %v495 = vsel %vm333, %v441, 0.0
    %496 = vadd.xlane.f32.xlu0 %v495
    %v497 = vpop.xlane.xlu0 %496
    %v498 = vsel %vm333, %v442, 0.0
    %499 = vadd.xlane.f32.xlu0 %v498
    %v500 = vpop.xlane.xlu0 %499
    %v501 = vsel %vm333, %v443, 0.0
    %502 = vadd.xlane.f32.xlu0 %v501
    %v503 = vpop.xlane.xlu0 %502
    %v504 = vsel %vm333, %v444, 0.0
    %505 = vadd.xlane.f32.xlu0 %v504
    %v506 = vpop.xlane.xlu0 %505
    %v507 = vsel %vm333, %v445, 0.0
    %508 = vadd.xlane.f32.xlu0 %v507
    %v509 = vpop.xlane.xlu0 %508
    %v510 = vsel %vm333, %v446, 0.0
    %511 = vadd.xlane.f32.xlu0 %v510
    %v512 = vpop.xlane.xlu0 %511
    %v513 = vsel %vm333, %v447, 0.0
    %514 = vadd.xlane.f32.xlu0 %v513
    %v515 = vpop.xlane.xlu0 %514
    %v516 = vsel %vm333, %v448, 0.0
    %517 = vadd.xlane.f32.xlu0 %v516
    %v518 = vpop.xlane.xlu0 %517
    %v519 = vsel %vm333, %v449, 0.0
    %520 = vadd.xlane.f32.xlu0 %v519
    %v521 = vpop.xlane.xlu0 %520
    %v522 = vsel %vm333, %v450, 0.0
    %523 = vadd.xlane.f32.xlu0 %v522
    %v524 = vpop.xlane.xlu0 %523
    %v525 = vsel %vm333, %v451, 0.0
    %526 = vadd.xlane.f32.xlu0 %v525
    %v527 = vpop.xlane.xlu0 %526
    %v528 = vsel %vm333, %v452, 0.0
    %529 = vadd.xlane.f32.xlu0 %v528
    %v530 = vpop.xlane.xlu0 %529
    %v531 = vsel %vm333, %v453, 0.0
    %532 = vadd.xlane.f32.xlu0 %v531
    %v533 = vpop.xlane.xlu0 %532
    %v534 = vsel %vm333, %v454, 0.0
    %535 = vadd.xlane.f32.xlu0 %v534
    %v536 = vpop.xlane.xlu0 %535
    %v537 = vsel %vm333, %v455, 0.0
    %538 = vadd.xlane.f32.xlu0 %v537
    %v539 = vpop.xlane.xlu0 %538
    %v540 = vsel %vm333, %v456, 0.0
    %541 = vadd.xlane.f32.xlu0 %v540
    %v542 = vpop.xlane.xlu0 %541
    %v543 = vsel %vm333, %v457, 0.0
    %544 = vadd.xlane.f32.xlu0 %v543
    %v545 = vpop.xlane.xlu0 %544
    %v546 = vsel %vm333, %v458, 0.0
    %547 = vadd.xlane.f32.xlu0 %v546
    %v548 = vpop.xlane.xlu0 %547
    %v549 = vsel %vm333, %v459, 0.0
    %550 = vadd.xlane.f32.xlu0 %v549
    %v551 = vpop.xlane.xlu0 %550
    %v552 = vsel %vm333, %v460, 0.0
    %553 = vadd.xlane.f32.xlu0 %v552
    %v554 = vpop.xlane.xlu0 %553
    %v555 = vsel %vm333, %v461, 0.0
    %556 = vadd.xlane.f32.xlu0 %v555
    %v557 = vpop.xlane.xlu0 %556
    %v558 = vrsqrt.pop %v464
    %v559 = vmul.f32 %v464, %v558
    %vm560 = vcmp.eq.f32.partialorder %v464, inf
    %v561 = vsel %vm560, %v464, %v559
    %vm562 = vcmp.eq.f32.partialorder %v464, 0.0
    %v563 = vand.u32 %v464, 2147483648
    %v564 = vsel %vm562, %v563, %v561
    %v565 = vrsqrt.pop %v467
    %v566 = vmul.f32 %v467, %v565
    %vm567 = vcmp.eq.f32.partialorder %v467, inf
    %v568 = vsel %vm567, %v467, %v566
    %vm569 = vcmp.eq.f32.partialorder %v467, 0.0
    %v570 = vand.u32 %v467, 2147483648
    %v571 = vsel %vm569, %v570, %v568
    %v572 = vrsqrt.pop %v470
    %v573 = vmul.f32 %v470, %v572
    %vm574 = vcmp.eq.f32.partialorder %v470, inf
    %v575 = vsel %vm574, %v470, %v573
    %vm576 = vcmp.eq.f32.partialorder %v470, 0.0
    %v577 = vand.u32 %v470, 2147483648
    %v578 = vsel %vm576, %v577, %v575
    %v579 = vrsqrt.pop %v473
    %v580 = vmul.f32 %v473, %v579
    %vm581 = vcmp.eq.f32.partialorder %v473, inf
    %v582 = vsel %vm581, %v473, %v580
    %vm583 = vcmp.eq.f32.partialorder %v473, 0.0
    %v584 = vand.u32 %v473, 2147483648
    %v585 = vsel %vm583, %v584, %v582
    %v586 = vrsqrt.pop %v476
    %v587 = vmul.f32 %v476, %v586
    %vm588 = vcmp.eq.f32.partialorder %v476, inf
    %v589 = vsel %vm588, %v476, %v587
    %vm590 = vcmp.eq.f32.partialorder %v476, 0.0
    %v591 = vand.u32 %v476, 2147483648
    %v592 = vsel %vm590, %v591, %v589
    %v593 = vrsqrt.pop %v479
    %v594 = vmul.f32 %v479, %v593
    %vm595 = vcmp.eq.f32.partialorder %v479, inf
    %v596 = vsel %vm595, %v479, %v594
    %vm597 = vcmp.eq.f32.partialorder %v479, 0.0
    %v598 = vand.u32 %v479, 2147483648
    %v599 = vsel %vm597, %v598, %v596
    %v600 = vrsqrt.pop %v482
    %v601 = vmul.f32 %v482, %v600
    %vm602 = vcmp.eq.f32.partialorder %v482, inf
    %v603 = vsel %vm602, %v482, %v601
    %vm604 = vcmp.eq.f32.partialorder %v482, 0.0
    %v605 = vand.u32 %v482, 2147483648
    %v606 = vsel %vm604, %v605, %v603
    %v607 = vrsqrt.pop %v485
    %v608 = vmul.f32 %v485, %v607
    %vm609 = vcmp.eq.f32.partialorder %v485, inf
    %v610 = vsel %vm609, %v485, %v608
    %vm611 = vcmp.eq.f32.partialorder %v485, 0.0
    %v612 = vand.u32 %v485, 2147483648
    %v613 = vsel %vm611, %v612, %v610
    %v614 = vrsqrt.pop %v488
    %v615 = vmul.f32 %v488, %v614
    %vm616 = vcmp.eq.f32.partialorder %v488, inf
    %v617 = vsel %vm616, %v488, %v615
    %vm618 = vcmp.eq.f32.partialorder %v488, 0.0
    %v619 = vand.u32 %v488, 2147483648
    %v620 = vsel %vm618, %v619, %v617
    %v621 = vrsqrt.pop %v491
    %v622 = vmul.f32 %v491, %v621
    %vm623 = vcmp.eq.f32.partialorder %v491, inf
    %v624 = vsel %vm623, %v491, %v622
    %vm625 = vcmp.eq.f32.partialorder %v491, 0.0
    %v626 = vand.u32 %v491, 2147483648
    %v627 = vsel %vm625, %v626, %v624
    %v628 = vrsqrt.pop %v494
    %v629 = vmul.f32 %v494, %v628
    %vm630 = vcmp.eq.f32.partialorder %v494, inf
    %v631 = vsel %vm630, %v494, %v629
    %vm632 = vcmp.eq.f32.partialorder %v494, 0.0
    %v633 = vand.u32 %v494, 2147483648
    %v634 = vsel %vm632, %v633, %v631
    %v635 = vrsqrt.pop %v497
    %v636 = vmul.f32 %v497, %v635
    %vm637 = vcmp.eq.f32.partialorder %v497, inf
    %v638 = vsel %vm637, %v497, %v636
    %vm639 = vcmp.eq.f32.partialorder %v497, 0.0
    %v640 = vand.u32 %v497, 2147483648
    %v641 = vsel %vm639, %v640, %v638
    %v642 = vrsqrt.pop %v500
    %v643 = vmul.f32 %v500, %v642
    %vm644 = vcmp.eq.f32.partialorder %v500, inf
    %v645 = vsel %vm644, %v500, %v643
    %vm646 = vcmp.eq.f32.partialorder %v500, 0.0
    %v647 = vand.u32 %v500, 2147483648
    %v648 = vsel %vm646, %v647, %v645
    %v649 = vrsqrt.pop %v503
    %v650 = vmul.f32 %v503, %v649
    %vm651 = vcmp.eq.f32.partialorder %v503, inf
    %v652 = vsel %vm651, %v503, %v650
    %vm653 = vcmp.eq.f32.partialorder %v503, 0.0
    %v654 = vand.u32 %v503, 2147483648
    %v655 = vsel %vm653, %v654, %v652
    %v656 = vrsqrt.pop %v506
    %v657 = vmul.f32 %v506, %v656
    %vm658 = vcmp.eq.f32.partialorder %v506, inf
    %v659 = vsel %vm658, %v506, %v657
    %vm660 = vcmp.eq.f32.partialorder %v506, 0.0
    %v661 = vand.u32 %v506, 2147483648
    %v662 = vsel %vm660, %v661, %v659
    %v663 = vrsqrt.pop %v509
    %v664 = vmul.f32 %v509, %v663
    %vm665 = vcmp.eq.f32.partialorder %v509, inf
    %v666 = vsel %vm665, %v509, %v664
    %vm667 = vcmp.eq.f32.partialorder %v509, 0.0
    %v668 = vand.u32 %v509, 2147483648
    %v669 = vsel %vm667, %v668, %v666
    %v670 = vrsqrt.pop %v512
    %v671 = vmul.f32 %v512, %v670
    %vm672 = vcmp.eq.f32.partialorder %v512, inf
    %v673 = vsel %vm672, %v512, %v671
    %vm674 = vcmp.eq.f32.partialorder %v512, 0.0
    %v675 = vand.u32 %v512, 2147483648
    %v676 = vsel %vm674, %v675, %v673
    %v677 = vrsqrt.pop %v515
    %v678 = vmul.f32 %v515, %v677
    %vm679 = vcmp.eq.f32.partialorder %v515, inf
    %v680 = vsel %vm679, %v515, %v678
    %vm681 = vcmp.eq.f32.partialorder %v515, 0.0
    %v682 = vand.u32 %v515, 2147483648
    %v683 = vsel %vm681, %v682, %v680
    %v684 = vrsqrt.pop %v518
    %v685 = vmul.f32 %v518, %v684
    %vm686 = vcmp.eq.f32.partialorder %v518, inf
    %v687 = vsel %vm686, %v518, %v685
    %vm688 = vcmp.eq.f32.partialorder %v518, 0.0
    %v689 = vand.u32 %v518, 2147483648
    %v690 = vsel %vm688, %v689, %v687
    %v691 = vrsqrt.pop %v521
    %v692 = vmul.f32 %v521, %v691
    %vm693 = vcmp.eq.f32.partialorder %v521, inf
    %v694 = vsel %vm693, %v521, %v692
    %vm695 = vcmp.eq.f32.partialorder %v521, 0.0
    %v696 = vand.u32 %v521, 2147483648
    %v697 = vsel %vm695, %v696, %v694
    %v698 = vrsqrt.pop %v524
    %v699 = vmul.f32 %v524, %v698
    %vm700 = vcmp.eq.f32.partialorder %v524, inf
    %v701 = vsel %vm700, %v524, %v699
    %vm702 = vcmp.eq.f32.partialorder %v524, 0.0
    %v703 = vand.u32 %v524, 2147483648
    %v704 = vsel %vm702, %v703, %v701
    %v705 = vrsqrt.pop %v527
    %v706 = vmul.f32 %v527, %v705
    %vm707 = vcmp.eq.f32.partialorder %v527, inf
    %v708 = vsel %vm707, %v527, %v706
    %vm709 = vcmp.eq.f32.partialorder %v527, 0.0
    %v710 = vand.u32 %v527, 2147483648
    %v711 = vsel %vm709, %v710, %v708
    %v712 = vrsqrt.pop %v530
    %v713 = vmul.f32 %v530, %v712
    %vm714 = vcmp.eq.f32.partialorder %v530, inf
    %v715 = vsel %vm714, %v530, %v713
    %vm716 = vcmp.eq.f32.partialorder %v530, 0.0
    %v717 = vand.u32 %v530, 2147483648
    %v718 = vsel %vm716, %v717, %v715
    %v719 = vrsqrt.pop %v533
    %v720 = vmul.f32 %v533, %v719
    %vm721 = vcmp.eq.f32.partialorder %v533, inf
    %v722 = vsel %vm721, %v533, %v720
    %vm723 = vcmp.eq.f32.partialorder %v533, 0.0
    %v724 = vand.u32 %v533, 2147483648
    %v725 = vsel %vm723, %v724, %v722
    %v726 = vrsqrt.pop %v536
    %v727 = vmul.f32 %v536, %v726
    %vm728 = vcmp.eq.f32.partialorder %v536, inf
    %v729 = vsel %vm728, %v536, %v727
    %vm730 = vcmp.eq.f32.partialorder %v536, 0.0
    %v731 = vand.u32 %v536, 2147483648
    %v732 = vsel %vm730, %v731, %v729
    %v733 = vrsqrt.pop %v539
    %v734 = vmul.f32 %v539, %v733
    %vm735 = vcmp.eq.f32.partialorder %v539, inf
    %v736 = vsel %vm735, %v539, %v734
    %vm737 = vcmp.eq.f32.partialorder %v539, 0.0
    %v738 = vand.u32 %v539, 2147483648
    %v739 = vsel %vm737, %v738, %v736
    %v740 = vrsqrt.pop %v542
    %v741 = vmul.f32 %v542, %v740
    %vm742 = vcmp.eq.f32.partialorder %v542, inf
    %v743 = vsel %vm742, %v542, %v741
    %vm744 = vcmp.eq.f32.partialorder %v542, 0.0
    %v745 = vand.u32 %v542, 2147483648
    %v746 = vsel %vm744, %v745, %v743
    %v747 = vrsqrt.pop %v545
    %v748 = vmul.f32 %v545, %v747
    %vm749 = vcmp.eq.f32.partialorder %v545, inf
    %v750 = vsel %vm749, %v545, %v748
    %vm751 = vcmp.eq.f32.partialorder %v545, 0.0
    %v752 = vand.u32 %v545, 2147483648
    %v753 = vsel %vm751, %v752, %v750
    %v754 = vrsqrt.pop %v548
    %v755 = vmul.f32 %v548, %v754
    %vm756 = vcmp.eq.f32.partialorder %v548, inf
    %v757 = vsel %vm756, %v548, %v755
    %vm758 = vcmp.eq.f32.partialorder %v548, 0.0
    %v759 = vand.u32 %v548, 2147483648
    %v760 = vsel %vm758, %v759, %v757
    %v761 = vrsqrt.pop %v551
    %v762 = vmul.f32 %v551, %v761
    %vm763 = vcmp.eq.f32.partialorder %v551, inf
    %v764 = vsel %vm763, %v551, %v762
    %vm765 = vcmp.eq.f32.partialorder %v551, 0.0
    %v766 = vand.u32 %v551, 2147483648
    %v767 = vsel %vm765, %v766, %v764
    %v768 = vrsqrt.pop %v554
    %v769 = vmul.f32 %v554, %v768
    %vm770 = vcmp.eq.f32.partialorder %v554, inf
    %v771 = vsel %vm770, %v554, %v769
    %vm772 = vcmp.eq.f32.partialorder %v554, 0.0
    %v773 = vand.u32 %v554, 2147483648
    %v774 = vsel %vm772, %v773, %v771
    %v775 = vrsqrt.pop %v557
    %v776 = vmul.f32 %v557, %v775
    %vm777 = vcmp.eq.f32.partialorder %v557, inf
    %v778 = vsel %vm777, %v557, %v776
    %vm779 = vcmp.eq.f32.partialorder %v557, 0.0
    %v780 = vand.u32 %v557, 2147483648
    %v781 = vsel %vm779, %v780, %v778
    %v782 = vmul.f32 %v210, %v210
    %v783 = vsel %vm333, %v782, 0.0
    %784 = vadd.xlane.f32.xlu0 %v783
    %v785 = vpop.xlane.xlu0 %784
    %v786 = vrsqrt.pop %v785
    %v787 = vmul.f32 %v785, %v786
    %vm788 = vcmp.eq.f32.partialorder %v785, inf
    %v789 = vsel %vm788, %v785, %v787
    %vm790 = vcmp.eq.f32.partialorder %v785, 0.0
    %v791 = vand.u32 %v785, 2147483648
    %v792 = vsel %vm790, %v791, %v789
    %v793 = vmax.f32 %v564, 1e-08
    %v794 = vmax.f32 %v571, 1e-08
    %v795 = vmax.f32 %v578, 1e-08
    %v796 = vmax.f32 %v585, 1e-08
    %v797 = vmax.f32 %v592, 1e-08
    %v798 = vmax.f32 %v599, 1e-08
    %v799 = vmax.f32 %v606, 1e-08
    %v800 = vmax.f32 %v613, 1e-08
    %v801 = vmax.f32 %v620, 1e-08
    %v802 = vmax.f32 %v627, 1e-08
    %v803 = vmax.f32 %v634, 1e-08
    %v804 = vmax.f32 %v641, 1e-08
    %v805 = vmax.f32 %v648, 1e-08
    %v806 = vmax.f32 %v655, 1e-08
    %v807 = vmax.f32 %v662, 1e-08
    %v808 = vmax.f32 %v669, 1e-08
    %v809 = vmax.f32 %v676, 1e-08
    %v810 = vmax.f32 %v683, 1e-08
    %v811 = vmax.f32 %v690, 1e-08
    %v812 = vmax.f32 %v697, 1e-08
    %v813 = vmax.f32 %v704, 1e-08
    %v814 = vmax.f32 %v711, 1e-08
    %v815 = vmax.f32 %v718, 1e-08
    %v816 = vmax.f32 %v725, 1e-08
    %v817 = vmax.f32 %v732, 1e-08
    %v818 = vmax.f32 %v739, 1e-08
    %v819 = vmax.f32 %v746, 1e-08
    %v820 = vmax.f32 %v753, 1e-08
    %v821 = vmax.f32 %v760, 1e-08
    %v822 = vmax.f32 %v767, 1e-08
    %v823 = vmax.f32 %v774, 1e-08
    %v824 = vmax.f32 %v781, 1e-08
    %v825 = vmax.f32 %v792, 1e-08
    %v827 = vlaneseq
    %v828 = vshrl.u32 %v827, 7
    %v829 = vsub.s32 0, %v828
    %v830 = vrot.slane %v825, %v829
    %v831 = vlaneseq
    %v832 = vshrl.u32 %v831, 7
    %v833 = vsub.s32 1, %v832
    %v834 = vrot.slane %v825, %v833
    %v835 = vlaneseq
    %v836 = vshrl.u32 %v835, 7
    %v837 = vsub.s32 2, %v836
    %v838 = vrot.slane %v825, %v837
    %v839 = vlaneseq
    %v840 = vshrl.u32 %v839, 7
    %v841 = vsub.s32 3, %v840
    %v842 = vrot.slane %v825, %v841
    %v843 = vlaneseq
    %v844 = vshrl.u32 %v843, 7
    %v845 = vsub.s32 4, %v844
    %v846 = vrot.slane %v825, %v845
    %v847 = vlaneseq
    %v848 = vshrl.u32 %v847, 7
    %v849 = vsub.s32 5, %v848
    %v850 = vrot.slane %v825, %v849
    %v851 = vlaneseq
    %v852 = vshrl.u32 %v851, 7
    %v853 = vsub.s32 6, %v852
    %v854 = vrot.slane %v825, %v853
    %v855 = vlaneseq
    %v856 = vshrl.u32 %v855, 7
    %v857 = vsub.s32 7, %v856
    %v858 = vrot.slane %v825, %v857
    %v867 = vmul.f32 %v793, %v830
    %v868 = vmul.f32 %v794, %v830
    %v869 = vmul.f32 %v795, %v830
    %v870 = vmul.f32 %v796, %v830
    %v871 = vmul.f32 %v797, %v834
    %v872 = vmul.f32 %v798, %v834
    %v873 = vmul.f32 %v799, %v834
    %v874 = vmul.f32 %v800, %v834
    %v875 = vmul.f32 %v801, %v838
    %v876 = vmul.f32 %v802, %v838
    %v877 = vmul.f32 %v803, %v838
    %v878 = vmul.f32 %v804, %v838
    %v879 = vmul.f32 %v805, %v842
    %v880 = vmul.f32 %v806, %v842
    %v881 = vmul.f32 %v807, %v842
    %v882 = vmul.f32 %v808, %v842
    %v883 = vmul.f32 %v809, %v846
    %v884 = vmul.f32 %v810, %v846
    %v885 = vmul.f32 %v811, %v846
    %v886 = vmul.f32 %v812, %v846
    %v887 = vmul.f32 %v813, %v850
    %v888 = vmul.f32 %v814, %v850
    %v889 = vmul.f32 %v815, %v850
    %v890 = vmul.f32 %v816, %v850
    %v891 = vmul.f32 %v817, %v854
    %v892 = vmul.f32 %v818, %v854
    %v893 = vmul.f32 %v819, %v854
    %v894 = vmul.f32 %v820, %v854
    %v895 = vmul.f32 %v821, %v858
    %v896 = vmul.f32 %v822, %v858
    %v897 = vmul.f32 %v823, %v858
    %v898 = vmul.f32 %v824, %v858
    %v899 = vrcp.pop %v867
    %v900 = vmul.f32 %v336, %v899
    %v901 = vrcp.pop %v868
    %v902 = vmul.f32 %v339, %v901
    %v903 = vrcp.pop %v869
    %v904 = vmul.f32 %v342, %v903
    %v905 = vrcp.pop %v870
    %v906 = vmul.f32 %v345, %v905
    %v907 = vrcp.pop %v871
    %v908 = vmul.f32 %v348, %v907
    %v909 = vrcp.pop %v872
    %v910 = vmul.f32 %v351, %v909
    %v911 = vrcp.pop %v873
    %v912 = vmul.f32 %v354, %v911
    %v913 = vrcp.pop %v874
    %v914 = vmul.f32 %v357, %v913
    %v915 = vrcp.pop %v875
    %v916 = vmul.f32 %v360, %v915
    %v917 = vrcp.pop %v876
    %v918 = vmul.f32 %v363, %v917
    %v919 = vrcp.pop %v877
    %v920 = vmul.f32 %v366, %v919
    %v921 = vrcp.pop %v878
    %v922 = vmul.f32 %v369, %v921
    %v923 = vrcp.pop %v879
    %v924 = vmul.f32 %v372, %v923
    %v925 = vrcp.pop %v880
    %v926 = vmul.f32 %v375, %v925
    %v927 = vrcp.pop %v881
    %v928 = vmul.f32 %v378, %v927
    %v929 = vrcp.pop %v882
    %v930 = vmul.f32 %v381, %v929
    %v931 = vrcp.pop %v883
    %v932 = vmul.f32 %v384, %v931
    %v933 = vrcp.pop %v884
    %v934 = vmul.f32 %v387, %v933
    %v935 = vrcp.pop %v885
    %v936 = vmul.f32 %v390, %v935
    %v937 = vrcp.pop %v886
    %v938 = vmul.f32 %v393, %v937
    %v939 = vrcp.pop %v887
    %v940 = vmul.f32 %v396, %v939
    %v941 = vrcp.pop %v888
    %v942 = vmul.f32 %v399, %v941
    %v943 = vrcp.pop %v889
    %v944 = vmul.f32 %v402, %v943
    %v945 = vrcp.pop %v890
    %v946 = vmul.f32 %v405, %v945
    %v947 = vrcp.pop %v891
    %v948 = vmul.f32 %v408, %v947
    %v949 = vrcp.pop %v892
    %v950 = vmul.f32 %v411, %v949
    %v951 = vrcp.pop %v893
    %v952 = vmul.f32 %v414, %v951
    %v953 = vrcp.pop %v894
    %v954 = vmul.f32 %v417, %v953
    %v955 = vrcp.pop %v895
    %v956 = vmul.f32 %v420, %v955
    %v957 = vrcp.pop %v896
    %v958 = vmul.f32 %v423, %v957
    %v959 = vrcp.pop %v897
    %v960 = vmul.f32 %v426, %v959
    %v961 = vrcp.pop %v898
    %v962 = vmul.f32 %v429, %v961
    %964 = vset.pattern.permute.xlu0 16
    %965 = vperm.xlu0 %964, %v155
    %v966 = vpop.permute.xlu0 %965
    %1000 = vset.pattern.permute.xlu0 0
    %1001 = vperm.xlu0 %1000, %v900
    %v1002 = vpop.permute.xlu0 %1001
    %1003 = vset.pattern.permute.xlu0 0
    %1004 = vperm.xlu0 %1003, %v902
    %v1005 = vpop.permute.xlu0 %1004
    %1006 = vset.pattern.permute.xlu0 0
    %1007 = vperm.xlu0 %1006, %v904
    %v1008 = vpop.permute.xlu0 %1007
    %1009 = vset.pattern.permute.xlu0 0
    %1010 = vperm.xlu0 %1009, %v906
    %v1011 = vpop.permute.xlu0 %1010
    %1012 = vset.pattern.permute.xlu0 0
    %1013 = vperm.xlu0 %1012, %v908
    %v1014 = vpop.permute.xlu0 %1013
    %1015 = vset.pattern.permute.xlu0 0
    %1016 = vperm.xlu0 %1015, %v910
    %v1017 = vpop.permute.xlu0 %1016
    %1018 = vset.pattern.permute.xlu0 0
    %1019 = vperm.xlu0 %1018, %v912
    %v1020 = vpop.permute.xlu0 %1019
    %1021 = vset.pattern.permute.xlu0 0
    %1022 = vperm.xlu0 %1021, %v914
    %v1023 = vpop.permute.xlu0 %1022
    %1024 = vset.pattern.permute.xlu0 0
    %1025 = vperm.xlu0 %1024, %v916
    %v1026 = vpop.permute.xlu0 %1025
    %1027 = vset.pattern.permute.xlu0 0
    %1028 = vperm.xlu0 %1027, %v918
    %v1029 = vpop.permute.xlu0 %1028
    %1030 = vset.pattern.permute.xlu0 0
    %1031 = vperm.xlu0 %1030, %v920
    %v1032 = vpop.permute.xlu0 %1031
    %1033 = vset.pattern.permute.xlu0 0
    %1034 = vperm.xlu0 %1033, %v922
    %v1035 = vpop.permute.xlu0 %1034
    %1036 = vset.pattern.permute.xlu0 0
    %1037 = vperm.xlu0 %1036, %v924
    %v1038 = vpop.permute.xlu0 %1037
    %1039 = vset.pattern.permute.xlu0 0
    %1040 = vperm.xlu0 %1039, %v926
    %v1041 = vpop.permute.xlu0 %1040
    %1042 = vset.pattern.permute.xlu0 0
    %1043 = vperm.xlu0 %1042, %v928
    %v1044 = vpop.permute.xlu0 %1043
    %1045 = vset.pattern.permute.xlu0 0
    %1046 = vperm.xlu0 %1045, %v930
    %v1047 = vpop.permute.xlu0 %1046
    %1048 = vset.pattern.permute.xlu0 0
    %1049 = vperm.xlu0 %1048, %v932
    %v1050 = vpop.permute.xlu0 %1049
    %1051 = vset.pattern.permute.xlu0 0
    %1052 = vperm.xlu0 %1051, %v934
    %v1053 = vpop.permute.xlu0 %1052
    %1054 = vset.pattern.permute.xlu0 0
    %1055 = vperm.xlu0 %1054, %v936
    %v1056 = vpop.permute.xlu0 %1055
    %1057 = vset.pattern.permute.xlu0 0
    %1058 = vperm.xlu0 %1057, %v938
    %v1059 = vpop.permute.xlu0 %1058
    %1060 = vset.pattern.permute.xlu0 0
    %1061 = vperm.xlu0 %1060, %v940
    %v1062 = vpop.permute.xlu0 %1061
    %1063 = vset.pattern.permute.xlu0 0
    %1064 = vperm.xlu0 %1063, %v942
    %v1065 = vpop.permute.xlu0 %1064
    %1066 = vset.pattern.permute.xlu0 0
    %1067 = vperm.xlu0 %1066, %v944
    %v1068 = vpop.permute.xlu0 %1067
    %1069 = vset.pattern.permute.xlu0 0
    %1070 = vperm.xlu0 %1069, %v946
    %v1071 = vpop.permute.xlu0 %1070
    %1072 = vset.pattern.permute.xlu0 0
    %1073 = vperm.xlu0 %1072, %v948
    %v1074 = vpop.permute.xlu0 %1073
    %1075 = vset.pattern.permute.xlu0 0
    %1076 = vperm.xlu0 %1075, %v950
    %v1077 = vpop.permute.xlu0 %1076
    %1078 = vset.pattern.permute.xlu0 0
    %1079 = vperm.xlu0 %1078, %v952
    %v1080 = vpop.permute.xlu0 %1079
    %1081 = vset.pattern.permute.xlu0 0
    %1082 = vperm.xlu0 %1081, %v954
    %v1083 = vpop.permute.xlu0 %1082
    %1084 = vset.pattern.permute.xlu0 0
    %1085 = vperm.xlu0 %1084, %v956
    %v1086 = vpop.permute.xlu0 %1085
    %1087 = vset.pattern.permute.xlu0 0
    %1088 = vperm.xlu0 %1087, %v958
    %v1089 = vpop.permute.xlu0 %1088
    %1090 = vset.pattern.permute.xlu0 0
    %1091 = vperm.xlu0 %1090, %v960
    %v1092 = vpop.permute.xlu0 %1091
    %1093 = vset.pattern.permute.xlu0 0
    %1094 = vperm.xlu0 %1093, %v962
    %v1095 = vpop.permute.xlu0 %1094
    %v1096 = vlaneseq
    %v1097 = vand.u32 %v1096, 127
    %v1098 = vlaneseq
    %v1099 = vshrl.u32 %v1098, 7
    %v1100 = vsub.s32 %v1097, %v1099
    %v1101 = vrot.slane %v1002, %v1100
    %v1102 = vadd.s32 %v1097, 4294967288
    %v1103 = vlaneseq
    %v1104 = vshrl.u32 %v1103, 7
    %v1105 = vsub.s32 %v1102, %v1104
    %v1106 = vrot.slane %v1005, %v1105
    %vm1107 = vcmask 130112
    %v1108 = vsel %vm1107, %v1106, %v1101
    %v1109 = vadd.s32 %v1097, 4294967280
    %v1110 = vlaneseq
    %v1111 = vshrl.u32 %v1110, 7
    %v1112 = vsub.s32 %v1109, %v1111
    %v1113 = vrot.slane %v1008, %v1112
    %vm1114 = vcmask 195712
    %v1115 = vsel %vm1114, %v1113, %v1108
    %v1116 = vadd.s32 %v1097, 4294967272
    %v1117 = vlaneseq
    %v1118 = vshrl.u32 %v1117, 7
    %v1119 = vsub.s32 %v1116, %v1118
    %v1120 = vrot.slane %v1011, %v1119
    %vm1121 = vcmask 261312
    %v1122 = vsel %vm1121, %v1120, %v1115
    %v1123 = vlaneseq
    %v1124 = vshrl.u32 %v1123, 7
    %v1125 = vsub.s32 %v1097, %v1124
    %v1126 = vrot.slane %v1014, %v1125
    %v1127 = vlaneseq
    %v1128 = vshrl.u32 %v1127, 7
    %v1129 = vsub.s32 %v1102, %v1128
    %v1130 = vrot.slane %v1017, %v1129
    %v1131 = vsel %vm1107, %v1130, %v1126
    %v1132 = vlaneseq
    %v1133 = vshrl.u32 %v1132, 7
    %v1134 = vsub.s32 %v1109, %v1133
    %v1135 = vrot.slane %v1020, %v1134
    %v1136 = vsel %vm1114, %v1135, %v1131
    %v1137 = vlaneseq
    %v1138 = vshrl.u32 %v1137, 7
    %v1139 = vsub.s32 %v1116, %v1138
    %v1140 = vrot.slane %v1023, %v1139
    %v1141 = vsel %vm1121, %v1140, %v1136
    %v1142 = vlaneseq
    %v1143 = vshrl.u32 %v1142, 7
    %v1144 = vsub.s32 %v1097, %v1143
    %v1145 = vrot.slane %v1026, %v1144
    %v1146 = vlaneseq
    %v1147 = vshrl.u32 %v1146, 7
    %v1148 = vsub.s32 %v1102, %v1147
    %v1149 = vrot.slane %v1029, %v1148
    %v1150 = vsel %vm1107, %v1149, %v1145
    %v1151 = vlaneseq
    %v1152 = vshrl.u32 %v1151, 7
    %v1153 = vsub.s32 %v1109, %v1152
    %v1154 = vrot.slane %v1032, %v1153
    %v1155 = vsel %vm1114, %v1154, %v1150
    %v1156 = vlaneseq
    %v1157 = vshrl.u32 %v1156, 7
    %v1158 = vsub.s32 %v1116, %v1157
    %v1159 = vrot.slane %v1035, %v1158
    %v1160 = vsel %vm1121, %v1159, %v1155
    %v1161 = vlaneseq
    %v1162 = vshrl.u32 %v1161, 7
    %v1163 = vsub.s32 %v1097, %v1162
    %v1164 = vrot.slane %v1038, %v1163
    %v1165 = vlaneseq
    %v1166 = vshrl.u32 %v1165, 7
    %v1167 = vsub.s32 %v1102, %v1166
    %v1168 = vrot.slane %v1041, %v1167
    %v1169 = vsel %vm1107, %v1168, %v1164
    %v1170 = vlaneseq
    %v1171 = vshrl.u32 %v1170, 7
    %v1172 = vsub.s32 %v1109, %v1171
    %v1173 = vrot.slane %v1044, %v1172
    %v1174 = vsel %vm1114, %v1173, %v1169
    %v1175 = vlaneseq
    %v1176 = vshrl.u32 %v1175, 7
    %v1177 = vsub.s32 %v1116, %v1176
    %v1178 = vrot.slane %v1047, %v1177
    %v1179 = vsel %vm1121, %v1178, %v1174
    %v1180 = vlaneseq
    %v1181 = vshrl.u32 %v1180, 7
    %v1182 = vsub.s32 %v1097, %v1181
    %v1183 = vrot.slane %v1050, %v1182
    %v1184 = vlaneseq
    %v1185 = vshrl.u32 %v1184, 7
    %v1186 = vsub.s32 %v1102, %v1185
    %v1187 = vrot.slane %v1053, %v1186
    %v1188 = vsel %vm1107, %v1187, %v1183
    %v1189 = vlaneseq
    %v1190 = vshrl.u32 %v1189, 7
    %v1191 = vsub.s32 %v1109, %v1190
    %v1192 = vrot.slane %v1056, %v1191
    %v1193 = vsel %vm1114, %v1192, %v1188
    %v1194 = vlaneseq
    %v1195 = vshrl.u32 %v1194, 7
    %v1196 = vsub.s32 %v1116, %v1195
    %v1197 = vrot.slane %v1059, %v1196
    %v1198 = vsel %vm1121, %v1197, %v1193
    %v1199 = vlaneseq
    %v1200 = vshrl.u32 %v1199, 7
    %v1201 = vsub.s32 %v1097, %v1200
    %v1202 = vrot.slane %v1062, %v1201
    %v1203 = vlaneseq
    %v1204 = vshrl.u32 %v1203, 7
    %v1205 = vsub.s32 %v1102, %v1204
    %v1206 = vrot.slane %v1065, %v1205
    %v1207 = vsel %vm1107, %v1206, %v1202
    %v1208 = vlaneseq
    %v1209 = vshrl.u32 %v1208, 7
    %v1210 = vsub.s32 %v1109, %v1209
    %v1211 = vrot.slane %v1068, %v1210
    %v1212 = vsel %vm1114, %v1211, %v1207
    %v1213 = vlaneseq
    %v1214 = vshrl.u32 %v1213, 7
    %v1215 = vsub.s32 %v1116, %v1214
    %v1216 = vrot.slane %v1071, %v1215
    %v1217 = vsel %vm1121, %v1216, %v1212
    %v1218 = vlaneseq
    %v1219 = vshrl.u32 %v1218, 7
    %v1220 = vsub.s32 %v1097, %v1219
    %v1221 = vrot.slane %v1074, %v1220
    %v1222 = vlaneseq
    %v1223 = vshrl.u32 %v1222, 7
    %v1224 = vsub.s32 %v1102, %v1223
    %v1225 = vrot.slane %v1077, %v1224
    %v1226 = vsel %vm1107, %v1225, %v1221
    %v1227 = vlaneseq
    %v1228 = vshrl.u32 %v1227, 7
    %v1229 = vsub.s32 %v1109, %v1228
    %v1230 = vrot.slane %v1080, %v1229
    %v1231 = vsel %vm1114, %v1230, %v1226
    %v1232 = vlaneseq
    %v1233 = vshrl.u32 %v1232, 7
    %v1234 = vsub.s32 %v1116, %v1233
    %v1235 = vrot.slane %v1083, %v1234
    %v1236 = vsel %vm1121, %v1235, %v1231
    %v1237 = vlaneseq
    %v1238 = vshrl.u32 %v1237, 7
    %v1239 = vsub.s32 %v1097, %v1238
    %v1240 = vrot.slane %v1086, %v1239
    %v1241 = vlaneseq
    %v1242 = vshrl.u32 %v1241, 7
    %v1243 = vsub.s32 %v1102, %v1242
    %v1244 = vrot.slane %v1089, %v1243
    %v1245 = vsel %vm1107, %v1244, %v1240
    %v1246 = vlaneseq
    %v1247 = vshrl.u32 %v1246, 7
    %v1248 = vsub.s32 %v1109, %v1247
    %v1249 = vrot.slane %v1092, %v1248
    %v1250 = vsel %vm1114, %v1249, %v1245
    %v1251 = vlaneseq
    %v1252 = vshrl.u32 %v1251, 7
    %v1253 = vsub.s32 %v1116, %v1252
    %v1254 = vrot.slane %v1095, %v1253
    %v1255 = vsel %vm1121, %v1254, %v1250
    %vm1256 = vcmask 1041409
    %v1257 = vsel %vm1256, %v1141, %v1122
    %vm1258 = vcmask 1042434
    %v1259 = vsel %vm1258, %v1160, %v1257
    %vm1260 = vcmask 1043459
    %v1261 = vsel %vm1260, %v1179, %v1259
    %vm1262 = vcmask 1044484
    %v1263 = vsel %vm1262, %v1198, %v1261
    %vm1264 = vcmask 1045509
    %v1265 = vsel %vm1264, %v1217, %v1263
    %vm1266 = vcmask 1046534
    %v1267 = vsel %vm1266, %v1236, %v1265
    %vm1268 = vcmask 1047559
    %v1269 = vsel %vm1268, %v1255, %v1267
    %v1271 = vmul.f32 %v966, %v1269
    %vm1272 = vcmask 261120
    %v1273 = vsel %vm1272, %v1271, -inf
    %1274 = vmax.xlane.f32.xlu0 %v1273
    %v1275 = vpop.xlane.xlu0 %1274
    %v1276 = vsub.f32 %v1271, %v1275
    %v1277 = vmul.f32 %v1276, 1.442695
    %v1278 = vpow.pop %v1277
    %v1279 = vsel %vm1272, %v1278, 0.0
    %1280 = vadd.xlane.f32.xlu0 %v1279
    %v1281 = vpop.xlane.xlu0 %1280
    %v1282 = vrcp.pop %v1281
    %v1283 = vmul.f32 %v1278, %v1282
    %1285 = vset.pattern.permute.xlu0 17
    %1286 = vperm.xlu0 %1285, %v159
    %v1287 = vpop.permute.xlu0 %1286
    %v1289 = vmul.f32 %v1287, %v1283
    %v1290 = vsub.f32 1.0, %v159
    %1292 = vset.pattern.permute.xlu0 17
    %1293 = vperm.xlu0 %1292, %v1290
    %v1294 = vpop.permute.xlu0 %1293
    %v1296 = vmul.f32 %v1294, %v113
    %v1297 = vadd.f32 %v1289, %v1296
    %1299 = vrot.lane.b32.xlu0 %v1297, 97
    %v1300 = vpop.permute.xlu0 %1299
    %1302 = vrot.lane.b32.xlu0 %v1297, 1
    %v1303 = vpop.permute.xlu0 %1302
    %vm1305 = vcmask 7168
    %v1306 = vsel %vm1305, %v1300, %v1303
    %1308 = vset.pattern.permute.xlu0 18
    %1309 = vperm.xlu0 %1308, %v176
    %v1310 = vpop.permute.xlu0 %1309
    %v1312 = vmul.f32 %v1310, %v1306
    %1313 = vset.pattern.permute.xlu0 19
    %1314 = vperm.xlu0 %1313, %v176
    %v1315 = vpop.permute.xlu0 %1314
    %v1317 = vmul.f32 %v1315, %v1297
    %v1318 = vadd.f32 %v1312, %v1317
    %1319 = vrot.lane.b32.xlu0 %v1297, 127
    %v1320 = vpop.permute.xlu0 %1319
    %1322 = vrot.lane.b32.xlu0 %v1297, 31
    %v1323 = vpop.permute.xlu0 %1322
    %vm1325 = vcmask 252928
    %v1326 = vsel %vm1325, %v1320, %v1323
    %1327 = vset.pattern.permute.xlu0 20
    %1328 = vperm.xlu0 %1327, %v176
    %v1329 = vpop.permute.xlu0 %1328
    %v1331 = vmul.f32 %v1329, %v1326
    %v1332 = vadd.f32 %v1318, %v1331
    %v1333 = vmax.f32 %v1332, 1e-30
    %v1334 = vlog2.pop %v1333
    %v1335 = vmul.f32 %v1334, 0.6931472
    %1337 = vset.pattern.permute.xlu0 21
    %1338 = vperm.xlu0 %1337, %v177
    %v1339 = vpop.permute.xlu0 %1338
    %v1341 = vmul.f32 %v1339, %v1335
    %v1342 = vmul.f32 %v1341, 1.442695
    %v1343 = vpow.pop %v1342
    %v1344 = vsel %vm1272, %v1343, 0.0
    %1345 = vadd.xlane.f32.xlu0 %v1344
    %v1346 = vpop.xlane.xlu0 %1345
    %v1347 = vadd.f32 %v1346, 1e-16
    %v1348 = vrcp.pop %v1347
    %v1349 = vmul.f32 %v1343, %v1348
    %v1350 = vlaneseq
    %v1351 = vshrl.u32 %v1350, 7
    %v1352 = vsub.s32 0, %v1351
    %v1353 = vrot.slane %v1349, %v1352
    %1355 = vbcast.lane.b32.xlu0 %v1353, 256
    %v1356 = vpop.permute.xlu0 %1355
    %s1358 = sor.u32 256, 8
    %1359 = vbcast.lane.b32.xlu0 %v1353, %s1358
    %v1360 = vpop.permute.xlu0 %1359
    %s1362 = sor.u32 256, 16
    %1363 = vbcast.lane.b32.xlu0 %v1353, %s1362
    %v1364 = vpop.permute.xlu0 %1363
    %s1366 = sor.u32 256, 24
    %1367 = vbcast.lane.b32.xlu0 %v1353, %s1366
    %v1368 = vpop.permute.xlu0 %1367
    %v1369 = vlaneseq
    %v1370 = vshrl.u32 %v1369, 7
    %v1371 = vsub.s32 1, %v1370
    %v1372 = vrot.slane %v1349, %v1371
    %1374 = vbcast.lane.b32.xlu0 %v1372, 256
    %v1375 = vpop.permute.xlu0 %1374
    %s1377 = sor.u32 256, 8
    %1378 = vbcast.lane.b32.xlu0 %v1372, %s1377
    %v1379 = vpop.permute.xlu0 %1378
    %s1381 = sor.u32 256, 16
    %1382 = vbcast.lane.b32.xlu0 %v1372, %s1381
    %v1383 = vpop.permute.xlu0 %1382
    %s1385 = sor.u32 256, 24
    %1386 = vbcast.lane.b32.xlu0 %v1372, %s1385
    %v1387 = vpop.permute.xlu0 %1386
    %v1388 = vlaneseq
    %v1389 = vshrl.u32 %v1388, 7
    %v1390 = vsub.s32 2, %v1389
    %v1391 = vrot.slane %v1349, %v1390
    %1393 = vbcast.lane.b32.xlu0 %v1391, 256
    %v1394 = vpop.permute.xlu0 %1393
    %s1396 = sor.u32 256, 8
    %1397 = vbcast.lane.b32.xlu0 %v1391, %s1396
    %v1398 = vpop.permute.xlu0 %1397
    %s1400 = sor.u32 256, 16
    %1401 = vbcast.lane.b32.xlu0 %v1391, %s1400
    %v1402 = vpop.permute.xlu0 %1401
    %s1404 = sor.u32 256, 24
    %1405 = vbcast.lane.b32.xlu0 %v1391, %s1404
    %v1406 = vpop.permute.xlu0 %1405
    %v1407 = vlaneseq
    %v1408 = vshrl.u32 %v1407, 7
    %v1409 = vsub.s32 3, %v1408
    %v1410 = vrot.slane %v1349, %v1409
    %1412 = vbcast.lane.b32.xlu0 %v1410, 256
    %v1413 = vpop.permute.xlu0 %1412
    %s1415 = sor.u32 256, 8
    %1416 = vbcast.lane.b32.xlu0 %v1410, %s1415
    %v1417 = vpop.permute.xlu0 %1416
    %s1419 = sor.u32 256, 16
    %1420 = vbcast.lane.b32.xlu0 %v1410, %s1419
    %v1421 = vpop.permute.xlu0 %1420
    %s1423 = sor.u32 256, 24
    %1424 = vbcast.lane.b32.xlu0 %v1410, %s1423
    %v1425 = vpop.permute.xlu0 %1424
    %v1426 = vlaneseq
    %v1427 = vshrl.u32 %v1426, 7
    %v1428 = vsub.s32 4, %v1427
    %v1429 = vrot.slane %v1349, %v1428
    %1431 = vbcast.lane.b32.xlu0 %v1429, 256
    %v1432 = vpop.permute.xlu0 %1431
    %s1434 = sor.u32 256, 8
    %1435 = vbcast.lane.b32.xlu0 %v1429, %s1434
    %v1436 = vpop.permute.xlu0 %1435
    %s1438 = sor.u32 256, 16
    %1439 = vbcast.lane.b32.xlu0 %v1429, %s1438
    %v1440 = vpop.permute.xlu0 %1439
    %s1442 = sor.u32 256, 24
    %1443 = vbcast.lane.b32.xlu0 %v1429, %s1442
    %v1444 = vpop.permute.xlu0 %1443
    %v1445 = vlaneseq
    %v1446 = vshrl.u32 %v1445, 7
    %v1447 = vsub.s32 5, %v1446
    %v1448 = vrot.slane %v1349, %v1447
    %1450 = vbcast.lane.b32.xlu0 %v1448, 256
    %v1451 = vpop.permute.xlu0 %1450
    %s1453 = sor.u32 256, 8
    %1454 = vbcast.lane.b32.xlu0 %v1448, %s1453
    %v1455 = vpop.permute.xlu0 %1454
    %s1457 = sor.u32 256, 16
    %1458 = vbcast.lane.b32.xlu0 %v1448, %s1457
    %v1459 = vpop.permute.xlu0 %1458
    %s1461 = sor.u32 256, 24
    %1462 = vbcast.lane.b32.xlu0 %v1448, %s1461
    %v1463 = vpop.permute.xlu0 %1462
    %v1464 = vlaneseq
    %v1465 = vshrl.u32 %v1464, 7
    %v1466 = vsub.s32 6, %v1465
    %v1467 = vrot.slane %v1349, %v1466
    %1469 = vbcast.lane.b32.xlu0 %v1467, 256
    %v1470 = vpop.permute.xlu0 %1469
    %s1472 = sor.u32 256, 8
    %1473 = vbcast.lane.b32.xlu0 %v1467, %s1472
    %v1474 = vpop.permute.xlu0 %1473
    %s1476 = sor.u32 256, 16
    %1477 = vbcast.lane.b32.xlu0 %v1467, %s1476
    %v1478 = vpop.permute.xlu0 %1477
    %s1480 = sor.u32 256, 24
    %1481 = vbcast.lane.b32.xlu0 %v1467, %s1480
    %v1482 = vpop.permute.xlu0 %1481
    %v1483 = vlaneseq
    %v1484 = vshrl.u32 %v1483, 7
    %v1485 = vsub.s32 7, %v1484
    %v1486 = vrot.slane %v1349, %v1485
    %1488 = vbcast.lane.b32.xlu0 %v1486, 256
    %v1489 = vpop.permute.xlu0 %1488
    %s1491 = sor.u32 256, 8
    %1492 = vbcast.lane.b32.xlu0 %v1486, %s1491
    %v1493 = vpop.permute.xlu0 %1492
    %s1495 = sor.u32 256, 16
    %1496 = vbcast.lane.b32.xlu0 %v1486, %s1495
    %v1497 = vpop.permute.xlu0 %1496
    %s1499 = sor.u32 256, 24
    %1500 = vbcast.lane.b32.xlu0 %v1486, %s1499
    %v1501 = vpop.permute.xlu0 %1500
    %v1502 = vcombine.high %v159, %v159
    %v1504 = vunpack.c.l.s4 1966171168
    %v1505 = vunpack.c.0.s8 %v1504
    %v1506 = vlaneseq
    %v1507 = vshrl.u32 %v1506, 7
    %v1508 = vsub.s32 %v1505, %v1507
    %v1509 = vrot.slane %v159, %v1508
    %v1511 = vunpack.c.l.s4 1966171168
    %v1512 = vunpack.c.0.s8 %v1511
    %v1513 = vlaneseq
    %v1514 = vshrl.u32 %v1513, 7
    %v1515 = vsub.s32 %v1512, %v1514
    %v1516 = vrot.slane %v1502, %v1515
    %v1517 = vcombine.high %v1509, %v1509
    %v1518 = vcombine.high %v1516, %v1516
    %v1520 = vunpack.c.l.s4 1966171168
    %v1521 = vunpack.c.0.s8 %v1520
    %v1522 = vlaneseq
    %v1523 = vshrl.u32 %v1522, 7
    %v1524 = vsub.s32 %v1521, %v1523
    %v1525 = vrot.slane %v1509, %v1524
    %v1527 = vunpack.c.l.s4 1966171168
    %v1528 = vunpack.c.0.s8 %v1527
    %v1529 = vlaneseq
    %v1530 = vshrl.u32 %v1529, 7
    %v1531 = vsub.s32 %v1528, %v1530
    %v1532 = vrot.slane %v1516, %v1531
    %v1534 = vunpack.c.l.s4 1966171168
    %v1535 = vunpack.c.0.s8 %v1534
    %v1536 = vlaneseq
    %v1537 = vshrl.u32 %v1536, 7
    %v1538 = vsub.s32 %v1535, %v1537
    %v1539 = vrot.slane %v1517, %v1538
    %v1541 = vunpack.c.l.s4 1966171168
    %v1542 = vunpack.c.0.s8 %v1541
    %v1543 = vlaneseq
    %v1544 = vshrl.u32 %v1543, 7
    %v1545 = vsub.s32 %v1542, %v1544
    %v1546 = vrot.slane %v1518, %v1545
    %v1547 = vcombine.high %v1525, %v1525
    %v1548 = vcombine.high %v1532, %v1532
    %v1549 = vcombine.high %v1539, %v1539
    %v1550 = vcombine.high %v1546, %v1546
    %v1551 = vlaneseq
    %v1552 = vshrl.u32 %v1551, 7
    %v1553 = vsub.s32 0, %v1552
    %v1554 = vrot.slane %v1525, %v1553
    %v1555 = vlaneseq
    %v1556 = vshrl.u32 %v1555, 7
    %v1557 = vsub.s32 0, %v1556
    %v1558 = vrot.slane %v1539, %v1557
    %v1559 = vlaneseq
    %v1560 = vshrl.u32 %v1559, 7
    %v1561 = vsub.s32 0, %v1560
    %v1562 = vrot.slane %v1547, %v1561
    %v1563 = vlaneseq
    %v1564 = vshrl.u32 %v1563, 7
    %v1565 = vsub.s32 0, %v1564
    %v1566 = vrot.slane %v1549, %v1565
    %v1567 = vlaneseq
    %v1568 = vshrl.u32 %v1567, 7
    %v1569 = vsub.s32 0, %v1568
    %v1570 = vrot.slane %v1532, %v1569
    %v1571 = vlaneseq
    %v1572 = vshrl.u32 %v1571, 7
    %v1573 = vsub.s32 0, %v1572
    %v1574 = vrot.slane %v1546, %v1573
    %v1575 = vlaneseq
    %v1576 = vshrl.u32 %v1575, 7
    %v1577 = vsub.s32 0, %v1576
    %v1578 = vrot.slane %v1548, %v1577
    %v1579 = vlaneseq
    %v1580 = vshrl.u32 %v1579, 7
    %v1581 = vsub.s32 0, %v1580
    %v1582 = vrot.slane %v1550, %v1581
    %v1591 = vmul.f32 %v1356, %v1554
    %v1592 = vmul.f32 %v1360, %v1554
    %v1593 = vmul.f32 %v1364, %v1554
    %v1594 = vmul.f32 %v1368, %v1554
    %v1595 = vmul.f32 %v1375, %v1558
    %v1596 = vmul.f32 %v1379, %v1558
    %v1597 = vmul.f32 %v1383, %v1558
    %v1598 = vmul.f32 %v1387, %v1558
    %v1599 = vmul.f32 %v1394, %v1562
    %v1600 = vmul.f32 %v1398, %v1562
    %v1601 = vmul.f32 %v1402, %v1562
    %v1602 = vmul.f32 %v1406, %v1562
    %v1603 = vmul.f32 %v1413, %v1566
    %v1604 = vmul.f32 %v1417, %v1566
    %v1605 = vmul.f32 %v1421, %v1566
    %v1606 = vmul.f32 %v1425, %v1566
    %v1607 = vmul.f32 %v1432, %v1570
    %v1608 = vmul.f32 %v1436, %v1570
    %v1609 = vmul.f32 %v1440, %v1570
    %v1610 = vmul.f32 %v1444, %v1570
    %v1611 = vmul.f32 %v1451, %v1574
    %v1612 = vmul.f32 %v1455, %v1574
    %v1613 = vmul.f32 %v1459, %v1574
    %v1614 = vmul.f32 %v1463, %v1574
    %v1615 = vmul.f32 %v1470, %v1578
    %v1616 = vmul.f32 %v1474, %v1578
    %v1617 = vmul.f32 %v1478, %v1578
    %v1618 = vmul.f32 %v1482, %v1578
    %v1619 = vmul.f32 %v1489, %v1582
    %v1620 = vmul.f32 %v1493, %v1582
    %v1621 = vmul.f32 %v1497, %v1582
    %v1622 = vmul.f32 %v1501, %v1582
    %v1624 = vcombine.high %v146, %v146
    %v1626 = vunpack.c.l.s4 1966171168
    %v1627 = vunpack.c.0.s8 %v1626
    %v1628 = vlaneseq
    %v1629 = vshrl.u32 %v1628, 7
    %v1630 = vsub.s32 %v1627, %v1629
    %v1631 = vrot.slane %v146, %v1630
    %v1633 = vunpack.c.l.s4 1966171168
    %v1634 = vunpack.c.0.s8 %v1633
    %v1635 = vlaneseq
    %v1636 = vshrl.u32 %v1635, 7
    %v1637 = vsub.s32 %v1634, %v1636
    %v1638 = vrot.slane %v1624, %v1637
    %v1639 = vcombine.high %v1631, %v1631
    %v1640 = vcombine.high %v1638, %v1638
    %v1642 = vunpack.c.l.s4 1966171168
    %v1643 = vunpack.c.0.s8 %v1642
    %v1644 = vlaneseq
    %v1645 = vshrl.u32 %v1644, 7
    %v1646 = vsub.s32 %v1643, %v1645
    %v1647 = vrot.slane %v1631, %v1646
    %v1649 = vunpack.c.l.s4 1966171168
    %v1650 = vunpack.c.0.s8 %v1649
    %v1651 = vlaneseq
    %v1652 = vshrl.u32 %v1651, 7
    %v1653 = vsub.s32 %v1650, %v1652
    %v1654 = vrot.slane %v1638, %v1653
    %v1656 = vunpack.c.l.s4 1966171168
    %v1657 = vunpack.c.0.s8 %v1656
    %v1658 = vlaneseq
    %v1659 = vshrl.u32 %v1658, 7
    %v1660 = vsub.s32 %v1657, %v1659
    %v1661 = vrot.slane %v1639, %v1660
    %v1663 = vunpack.c.l.s4 1966171168
    %v1664 = vunpack.c.0.s8 %v1663
    %v1665 = vlaneseq
    %v1666 = vshrl.u32 %v1665, 7
    %v1667 = vsub.s32 %v1664, %v1666
    %v1668 = vrot.slane %v1640, %v1667
    %v1669 = vcombine.high %v1647, %v1647
    %v1670 = vcombine.high %v1654, %v1654
    %v1671 = vcombine.high %v1661, %v1661
    %v1672 = vcombine.high %v1668, %v1668
    %v1673 = vlaneseq
    %v1674 = vshrl.u32 %v1673, 7
    %v1675 = vsub.s32 0, %v1674
    %v1676 = vrot.slane %v1647, %v1675
    %v1677 = vlaneseq
    %v1678 = vshrl.u32 %v1677, 7
    %v1679 = vsub.s32 0, %v1678
    %v1680 = vrot.slane %v1661, %v1679
    %v1681 = vlaneseq
    %v1682 = vshrl.u32 %v1681, 7
    %v1683 = vsub.s32 0, %v1682
    %v1684 = vrot.slane %v1669, %v1683
    %v1685 = vlaneseq
    %v1686 = vshrl.u32 %v1685, 7
    %v1687 = vsub.s32 0, %v1686
    %v1688 = vrot.slane %v1671, %v1687
    %v1689 = vlaneseq
    %v1690 = vshrl.u32 %v1689, 7
    %v1691 = vsub.s32 0, %v1690
    %v1692 = vrot.slane %v1654, %v1691
    %v1693 = vlaneseq
    %v1694 = vshrl.u32 %v1693, 7
    %v1695 = vsub.s32 0, %v1694
    %v1696 = vrot.slane %v1668, %v1695
    %v1697 = vlaneseq
    %v1698 = vshrl.u32 %v1697, 7
    %v1699 = vsub.s32 0, %v1698
    %v1700 = vrot.slane %v1670, %v1699
    %v1701 = vlaneseq
    %v1702 = vshrl.u32 %v1701, 7
    %v1703 = vsub.s32 0, %v1702
    %v1704 = vrot.slane %v1672, %v1703
    %v1713 = vmul.f32 %v1356, %v1676
    %v1714 = vmul.f32 %v1360, %v1676
    %v1715 = vmul.f32 %v1364, %v1676
    %v1716 = vmul.f32 %v1368, %v1676
    %v1717 = vmul.f32 %v1375, %v1680
    %v1718 = vmul.f32 %v1379, %v1680
    %v1719 = vmul.f32 %v1383, %v1680
    %v1720 = vmul.f32 %v1387, %v1680
    %v1721 = vmul.f32 %v1394, %v1684
    %v1722 = vmul.f32 %v1398, %v1684
    %v1723 = vmul.f32 %v1402, %v1684
    %v1724 = vmul.f32 %v1406, %v1684
    %v1725 = vmul.f32 %v1413, %v1688
    %v1726 = vmul.f32 %v1417, %v1688
    %v1727 = vmul.f32 %v1421, %v1688
    %v1728 = vmul.f32 %v1425, %v1688
    %v1729 = vmul.f32 %v1432, %v1692
    %v1730 = vmul.f32 %v1436, %v1692
    %v1731 = vmul.f32 %v1440, %v1692
    %v1732 = vmul.f32 %v1444, %v1692
    %v1733 = vmul.f32 %v1451, %v1696
    %v1734 = vmul.f32 %v1455, %v1696
    %v1735 = vmul.f32 %v1459, %v1696
    %v1736 = vmul.f32 %v1463, %v1696
    %v1737 = vmul.f32 %v1470, %v1700
    %v1738 = vmul.f32 %v1474, %v1700
    %v1739 = vmul.f32 %v1478, %v1700
    %v1740 = vmul.f32 %v1482, %v1700
    %v1741 = vmul.f32 %v1489, %v1704
    %v1742 = vmul.f32 %v1493, %v1704
    %v1743 = vmul.f32 %v1497, %v1704
    %v1744 = vmul.f32 %v1501, %v1704
    %v1745 = vsub.f32 1.0, %v1591
    %v1746 = vsub.f32 1.0, %v1592
    %v1747 = vsub.f32 1.0, %v1593
    %v1748 = vsub.f32 1.0, %v1594
    %v1749 = vsub.f32 1.0, %v1595
    %v1750 = vsub.f32 1.0, %v1596
    %v1751 = vsub.f32 1.0, %v1597
    %v1752 = vsub.f32 1.0, %v1598
    %v1753 = vsub.f32 1.0, %v1599
    %v1754 = vsub.f32 1.0, %v1600
    %v1755 = vsub.f32 1.0, %v1601
    %v1756 = vsub.f32 1.0, %v1602
    %v1757 = vsub.f32 1.0, %v1603
    %v1758 = vsub.f32 1.0, %v1604
    %v1759 = vsub.f32 1.0, %v1605
    %v1760 = vsub.f32 1.0, %v1606
    %v1761 = vsub.f32 1.0, %v1607
    %v1762 = vsub.f32 1.0, %v1608
    %v1763 = vsub.f32 1.0, %v1609
    %v1764 = vsub.f32 1.0, %v1610
    %v1765 = vsub.f32 1.0, %v1611
    %v1766 = vsub.f32 1.0, %v1612
    %v1767 = vsub.f32 1.0, %v1613
    %v1768 = vsub.f32 1.0, %v1614
    %v1769 = vsub.f32 1.0, %v1615
    %v1770 = vsub.f32 1.0, %v1616
    %v1771 = vsub.f32 1.0, %v1617
    %v1772 = vsub.f32 1.0, %v1618
    %v1773 = vsub.f32 1.0, %v1619
    %v1774 = vsub.f32 1.0, %v1620
    %v1775 = vsub.f32 1.0, %v1621
    %v1776 = vsub.f32 1.0, %v1622
    %1809 = vrot.lane.b32.xlu0 %v1745, 90
    %v1810 = vpop.permute.xlu0 %1809
    %1811 = vrot.lane.b32.xlu0 %v1746, 90
    %v1812 = vpop.permute.xlu0 %1811
    %1813 = vrot.lane.b32.xlu0 %v1747, 90
    %v1814 = vpop.permute.xlu0 %1813
    %1815 = vrot.lane.b32.xlu0 %v1748, 90
    %v1816 = vpop.permute.xlu0 %1815
    %1817 = vrot.lane.b32.xlu0 %v1749, 90
    %v1818 = vpop.permute.xlu0 %1817
    %1819 = vrot.lane.b32.xlu0 %v1750, 90
    %v1820 = vpop.permute.xlu0 %1819
    %1821 = vrot.lane.b32.xlu0 %v1751, 90
    %v1822 = vpop.permute.xlu0 %1821
    %1823 = vrot.lane.b32.xlu0 %v1752, 90
    %v1824 = vpop.permute.xlu0 %1823
    %1825 = vrot.lane.b32.xlu0 %v1753, 90
    %v1826 = vpop.permute.xlu0 %1825
    %1827 = vrot.lane.b32.xlu0 %v1754, 90
    %v1828 = vpop.permute.xlu0 %1827
    %1829 = vrot.lane.b32.xlu0 %v1755, 90
    %v1830 = vpop.permute.xlu0 %1829
    %1831 = vrot.lane.b32.xlu0 %v1756, 90
    %v1832 = vpop.permute.xlu0 %1831
    %1833 = vrot.lane.b32.xlu0 %v1757, 90
    %v1834 = vpop.permute.xlu0 %1833
    %1835 = vrot.lane.b32.xlu0 %v1758, 90
    %v1836 = vpop.permute.xlu0 %1835
    %1837 = vrot.lane.b32.xlu0 %v1759, 90
    %v1838 = vpop.permute.xlu0 %1837
    %1839 = vrot.lane.b32.xlu0 %v1760, 90
    %v1840 = vpop.permute.xlu0 %1839
    %1841 = vrot.lane.b32.xlu0 %v1761, 90
    %v1842 = vpop.permute.xlu0 %1841
    %1843 = vrot.lane.b32.xlu0 %v1762, 90
    %v1844 = vpop.permute.xlu0 %1843
    %1845 = vrot.lane.b32.xlu0 %v1763, 90
    %v1846 = vpop.permute.xlu0 %1845
    %1847 = vrot.lane.b32.xlu0 %v1764, 90
    %v1848 = vpop.permute.xlu0 %1847
    %1849 = vrot.lane.b32.xlu0 %v1765, 90
    %v1850 = vpop.permute.xlu0 %1849
    %1851 = vrot.lane.b32.xlu0 %v1766, 90
    %v1852 = vpop.permute.xlu0 %1851
    %1853 = vrot.lane.b32.xlu0 %v1767, 90
    %v1854 = vpop.permute.xlu0 %1853
    %1855 = vrot.lane.b32.xlu0 %v1768, 90
    %v1856 = vpop.permute.xlu0 %1855
    %1857 = vrot.lane.b32.xlu0 %v1769, 90
    %v1858 = vpop.permute.xlu0 %1857
    %1859 = vrot.lane.b32.xlu0 %v1770, 90
    %v1860 = vpop.permute.xlu0 %1859
    %1861 = vrot.lane.b32.xlu0 %v1771, 90
    %v1862 = vpop.permute.xlu0 %1861
    %1863 = vrot.lane.b32.xlu0 %v1772, 90
    %v1864 = vpop.permute.xlu0 %1863
    %1865 = vrot.lane.b32.xlu0 %v1773, 90
    %v1866 = vpop.permute.xlu0 %1865
    %1867 = vrot.lane.b32.xlu0 %v1774, 90
    %v1868 = vpop.permute.xlu0 %1867
    %1869 = vrot.lane.b32.xlu0 %v1775, 90
    %v1870 = vpop.permute.xlu0 %1869
    %1871 = vrot.lane.b32.xlu0 %v1776, 90
    %v1872 = vpop.permute.xlu0 %1871
    %v1905 = vmul.f32 %v114, %v1810
    %v1906 = vmul.f32 %v115, %v1812
    %v1907 = vmul.f32 %v116, %v1814
    %v1908 = vmul.f32 %v117, %v1816
    %v1909 = vmul.f32 %v118, %v1818
    %v1910 = vmul.f32 %v119, %v1820
    %v1911 = vmul.f32 %v120, %v1822
    %v1912 = vmul.f32 %v121, %v1824
    %v1913 = vmul.f32 %v122, %v1826
    %v1914 = vmul.f32 %v123, %v1828
    %v1915 = vmul.f32 %v124, %v1830
    %v1916 = vmul.f32 %v125, %v1832
    %v1917 = vmul.f32 %v126, %v1834
    %v1918 = vmul.f32 %v127, %v1836
    %v1919 = vmul.f32 %v128, %v1838
    %v1920 = vmul.f32 %v129, %v1840
    %v1921 = vmul.f32 %v130, %v1842
    %v1922 = vmul.f32 %v131, %v1844
    %v1923 = vmul.f32 %v132, %v1846
    %v1924 = vmul.f32 %v133, %v1848
    %v1925 = vmul.f32 %v134, %v1850
    %v1926 = vmul.f32 %v135, %v1852
    %v1927 = vmul.f32 %v136, %v1854
    %v1928 = vmul.f32 %v137, %v1856
    %v1929 = vmul.f32 %v138, %v1858
    %v1930 = vmul.f32 %v139, %v1860
    %v1931 = vmul.f32 %v140, %v1862
    %v1932 = vmul.f32 %v141, %v1864
    %v1933 = vmul.f32 %v142, %v1866
    %v1934 = vmul.f32 %v143, %v1868
    %v1935 = vmul.f32 %v144, %v1870
    %v1936 = vmul.f32 %v145, %v1872
    %1969 = vrot.lane.b32.xlu0 %v1713, 106
    %v1970 = vpop.permute.xlu0 %1969
    %1971 = vrot.lane.b32.xlu0 %v1714, 106
    %v1972 = vpop.permute.xlu0 %1971
    %1973 = vrot.lane.b32.xlu0 %v1715, 106
    %v1974 = vpop.permute.xlu0 %1973
    %1975 = vrot.lane.b32.xlu0 %v1716, 106
    %v1976 = vpop.permute.xlu0 %1975
    %1977 = vrot.lane.b32.xlu0 %v1717, 106
    %v1978 = vpop.permute.xlu0 %1977
    %1979 = vrot.lane.b32.xlu0 %v1718, 106
    %v1980 = vpop.permute.xlu0 %1979
    %1981 = vrot.lane.b32.xlu0 %v1719, 106
    %v1982 = vpop.permute.xlu0 %1981
    %1983 = vrot.lane.b32.xlu0 %v1720, 106
    %v1984 = vpop.permute.xlu0 %1983
    %1985 = vrot.lane.b32.xlu0 %v1721, 106
    %v1986 = vpop.permute.xlu0 %1985
    %1987 = vrot.lane.b32.xlu0 %v1722, 106
    %v1988 = vpop.permute.xlu0 %1987
    %1989 = vrot.lane.b32.xlu0 %v1723, 106
    %v1990 = vpop.permute.xlu0 %1989
    %1991 = vrot.lane.b32.xlu0 %v1724, 106
    %v1992 = vpop.permute.xlu0 %1991
    %1993 = vrot.lane.b32.xlu0 %v1725, 106
    %v1994 = vpop.permute.xlu0 %1993
    %1995 = vrot.lane.b32.xlu0 %v1726, 106
    %v1996 = vpop.permute.xlu0 %1995
    %1997 = vrot.lane.b32.xlu0 %v1727, 106
    %v1998 = vpop.permute.xlu0 %1997
    %1999 = vrot.lane.b32.xlu0 %v1728, 106
    %v2000 = vpop.permute.xlu0 %1999
    %2001 = vrot.lane.b32.xlu0 %v1729, 106
    %v2002 = vpop.permute.xlu0 %2001
    %2003 = vrot.lane.b32.xlu0 %v1730, 106
    %v2004 = vpop.permute.xlu0 %2003
    %2005 = vrot.lane.b32.xlu0 %v1731, 106
    %v2006 = vpop.permute.xlu0 %2005
    %2007 = vrot.lane.b32.xlu0 %v1732, 106
    %v2008 = vpop.permute.xlu0 %2007
    %2009 = vrot.lane.b32.xlu0 %v1733, 106
    %v2010 = vpop.permute.xlu0 %2009
    %2011 = vrot.lane.b32.xlu0 %v1734, 106
    %v2012 = vpop.permute.xlu0 %2011
    %2013 = vrot.lane.b32.xlu0 %v1735, 106
    %v2014 = vpop.permute.xlu0 %2013
    %2015 = vrot.lane.b32.xlu0 %v1736, 106
    %v2016 = vpop.permute.xlu0 %2015
    %2017 = vrot.lane.b32.xlu0 %v1737, 106
    %v2018 = vpop.permute.xlu0 %2017
    %2019 = vrot.lane.b32.xlu0 %v1738, 106
    %v2020 = vpop.permute.xlu0 %2019
    %2021 = vrot.lane.b32.xlu0 %v1739, 106
    %v2022 = vpop.permute.xlu0 %2021
    %2023 = vrot.lane.b32.xlu0 %v1740, 106
    %v2024 = vpop.permute.xlu0 %2023
    %2025 = vrot.lane.b32.xlu0 %v1741, 106
    %v2026 = vpop.permute.xlu0 %2025
    %2027 = vrot.lane.b32.xlu0 %v1742, 106
    %v2028 = vpop.permute.xlu0 %2027
    %2029 = vrot.lane.b32.xlu0 %v1743, 106
    %v2030 = vpop.permute.xlu0 %2029
    %2031 = vrot.lane.b32.xlu0 %v1744, 106
    %v2032 = vpop.permute.xlu0 %2031
    %v2065 = vadd.f32 %v1905, %v1970
    %v2066 = vadd.f32 %v1906, %v1972
    %v2067 = vadd.f32 %v1907, %v1974
    %v2068 = vadd.f32 %v1908, %v1976
    %v2069 = vadd.f32 %v1909, %v1978
    %v2070 = vadd.f32 %v1910, %v1980
    %v2071 = vadd.f32 %v1911, %v1982
    %v2072 = vadd.f32 %v1912, %v1984
    %v2073 = vadd.f32 %v1913, %v1986
    %v2074 = vadd.f32 %v1914, %v1988
    %v2075 = vadd.f32 %v1915, %v1990
    %v2076 = vadd.f32 %v1916, %v1992
    %v2077 = vadd.f32 %v1917, %v1994
    %v2078 = vadd.f32 %v1918, %v1996
    %v2079 = vadd.f32 %v1919, %v1998
    %v2080 = vadd.f32 %v1920, %v2000
    %v2081 = vadd.f32 %v1921, %v2002
    %v2082 = vadd.f32 %v1922, %v2004
    %v2083 = vadd.f32 %v1923, %v2006
    %v2084 = vadd.f32 %v1924, %v2008
    %v2085 = vadd.f32 %v1925, %v2010
    %v2086 = vadd.f32 %v1926, %v2012
    %v2087 = vadd.f32 %v1927, %v2014
    %v2088 = vadd.f32 %v1928, %v2016
    %v2089 = vadd.f32 %v1929, %v2018
    %v2090 = vadd.f32 %v1930, %v2020
    %v2091 = vadd.f32 %v1931, %v2022
    %v2092 = vadd.f32 %v1932, %v2024
    %v2093 = vadd.f32 %v1933, %v2026
    %v2094 = vadd.f32 %v1934, %v2028
    %v2095 = vadd.f32 %v1935, %v2030
    %v2096 = vadd.f32 %v1936, %v2032
    %2097 = vst.msk [vmem:[#allocation2] sm:$0xff] %vm1272, %v1349
    %2098 = vst.msk [vmem:[%s6] sm:$0xff] %vm333, %v2065
    %2099 = vst.msk [vmem:[%s6 + $0x8] sm:$0xff] %vm333, %v2066
    %2100 = vst.msk [vmem:[%s6 + $0x10] sm:$0xff] %vm333, %v2067
    %2101 = vst.msk [vmem:[%s6 + $0x18] sm:$0xff] %vm333, %v2068
    %2102 = vst.msk [vmem:[%s6 + $0x20] sm:$0xff] %vm333, %v2069
    %2103 = vst.msk [vmem:[%s6 + $0x28] sm:$0xff] %vm333, %v2070
    %2104 = vst.msk [vmem:[%s6 + $0x30] sm:$0xff] %vm333, %v2071
    %2105 = vst.msk [vmem:[%s6 + $0x38] sm:$0xff] %vm333, %v2072
    %2106 = vst.msk [vmem:[%s6 + $0x40] sm:$0xff] %vm333, %v2073
    %2107 = vst.msk [vmem:[%s6 + $0x48] sm:$0xff] %vm333, %v2074
    %2108 = vst.msk [vmem:[%s6 + $0x50] sm:$0xff] %vm333, %v2075
    %2109 = vst.msk [vmem:[%s6 + $0x58] sm:$0xff] %vm333, %v2076
    %2110 = vst.msk [vmem:[%s6 + $0x60] sm:$0xff] %vm333, %v2077
    %2111 = vst.msk [vmem:[%s6 + $0x68] sm:$0xff] %vm333, %v2078
    %2112 = vst.msk [vmem:[%s6 + $0x70] sm:$0xff] %vm333, %v2079
    %2113 = vst.msk [vmem:[%s6 + $0x78] sm:$0xff] %vm333, %v2080
    %2114 = vst.msk [vmem:[%s6 + $0x80] sm:$0xff] %vm333, %v2081
    %2115 = vst.msk [vmem:[%s6 + $0x88] sm:$0xff] %vm333, %v2082
    %2116 = vst.msk [vmem:[%s6 + $0x90] sm:$0xff] %vm333, %v2083
    %2117 = vst.msk [vmem:[%s6 + $0x98] sm:$0xff] %vm333, %v2084
    %2118 = vst.msk [vmem:[%s6 + $0xa0] sm:$0xff] %vm333, %v2085
    %2119 = vst.msk [vmem:[%s6 + $0xa8] sm:$0xff] %vm333, %v2086
    %2120 = vst.msk [vmem:[%s6 + $0xb0] sm:$0xff] %vm333, %v2087
    %2121 = vst.msk [vmem:[%s6 + $0xb8] sm:$0xff] %vm333, %v2088
    %2122 = vst.msk [vmem:[%s6 + $0xc0] sm:$0xff] %vm333, %v2089
    %2123 = vst.msk [vmem:[%s6 + $0xc8] sm:$0xff] %vm333, %v2090
    %2124 = vst.msk [vmem:[%s6 + $0xd0] sm:$0xff] %vm333, %v2091
    %2125 = vst.msk [vmem:[%s6 + $0xd8] sm:$0xff] %vm333, %v2092
    %2126 = vst.msk [vmem:[%s6 + $0xe0] sm:$0xff] %vm333, %v2093
    %2127 = vst.msk [vmem:[%s6 + $0xe8] sm:$0xff] %vm333, %v2094
    %2128 = vst.msk [vmem:[%s6 + $0xf0] sm:$0xff] %vm333, %v2095
    %2129 = vst.msk [vmem:[%s6 + $0xf8] sm:$0xff] %vm333, %v2096
    // Predicated region
    $region22: #{tpu_custom_call.1} parent=1 // pred_check
      _
    $region23: #{tpu_custom_call.1} parent=1 // pred_check_branch
      %2131 = sbr.rel (0) target = $region25
    $region24: #{tpu_custom_call.1} parent=1 // pred_region
      %s2133 = ssub.s32 128, 128
      %2134 = vsyncadd [#allocation3], %s2133
      %s2136 = sshll.u32 [#allocation2], 4
      %s2137 = int_to_ptr.vmem [resolvable:$true] %s2136
      %2139 = dma.vmem_to_hbm [thread:$0]  %s2137, 128, %s5, [#allocation3]
    $region25: #{tpu_custom_call.1} parent=1 // pred_fallthru
      _
    // Predicated region
    $region26: #{tpu_custom_call.1} parent=1 // pred_check
      _
    $region27: #{tpu_custom_call.1} parent=1 // pred_check_branch
      %2141 = sbr.rel (0) target = $region29
    $region28: #{tpu_custom_call.1} parent=1 // pred_region
      _
    $region29: #{tpu_custom_call.1} parent=1 // pred_fallthru
      _
    // Predicated region
    $region30: #{tpu_custom_call.1} parent=1 // pred_check
      _
    $region31: #{tpu_custom_call.1} parent=1 // pred_check_branch
      %2143 = sbr.rel (0) target = $region33
    $region32: #{tpu_custom_call.1} parent=1 // pred_region
      %2144 = dma.done [#allocation3], 128
    $region33: #{tpu_custom_call.1} parent=1 // pred_fallthru
      _
    // Predicated region
    $region34: #{tpu_custom_call.1} parent=1 // pred_check
      _
    $region35: #{tpu_custom_call.1} parent=1 // pred_check_branch
      %2146 = sbr.rel (0) target = $region37
    $region36: #{tpu_custom_call.1} parent=1 // pred_region
      _
    $region37: #{tpu_custom_call.1} parent=1 // pred_fallthru
      _
    %2147 = vsyncpa [#allocation3], 1

</llo_original>
